<compile_context>
chip_gen: v7x
topology: tpu7x:2x2x1
jax: 0.10.0
libtpu: 0.0.40
codegen_flags: <defaults>
</compile_context>

<pallas_src>
import math

import jax
import jax.numpy as jnp
from jax.experimental import pallas as pl
from jax.experimental.pallas import tpu as pltpu  # noqa: F401  (TPU backend)

# ----------------------------- configuration -------------------------------
BATCH = 2
SEQ_LEN = 64          # "inputsize" for this synthetic run
IN_CHANNELS = 4
INIT_CONV = 8         # init_conv
NUM_CLASSES = 8
POOL_DIM = 8
FILTER_RATE = 2
LAYERS = [1, 1, 1]    # three residual stages, one block each
LIN_SIZE = int(INIT_CONV * FILTER_RATE ** len(LAYERS) * POOL_DIM)       # 512
C_LAST = int(INIT_CONV * FILTER_RATE ** (len(LAYERS) - 1))              # 32
FLAT_DIM = C_LAST * POOL_DIM                                            # 256
OUT_DIM = 2           # regression=False
BN_EPS = 1e-5


# --------------------- kernel A: fused convolutional branch -----------------
def make_branch_kernel(has_downsample):
    """Whole conv branch: conv0 -> 3 residual blocks -> adaptive avg pool.

    Activations are (C, 2B*L) float32 (channels on sublanes, batch*length on
    lanes, 2B*L = 256 lanes -> lane-dense vregs).  Each conv is one matmul of
    the BN-folded weight (Cout, 3*Cin) with an in-kernel im2col (3*Cin, 2B*L).
    """

    def kernel(x_ref, mprev_ref, mnext_ref, pool_ref, *rest):
        *w_refs, out_ref = rest
        mprev = mprev_ref[...]            # (1, 2B*L): zero at l==0 of each sample
        mnext = mnext_ref[...]            # (1, 2B*L): zero at l==L-1 of each sample
        relu = lambda v: jnp.maximum(v, 0.0)

        def conv3(h, w_ref):
            # h: (Cin, N);  w_ref: (Cout, 3*Cin) with BN scale folded in.
            cin, n = h.shape
            zero = jnp.zeros((cin, 1), jnp.float32)
            h_prev = jnp.concatenate([zero, h[:, : n - 1]], axis=1) * mprev  # x[l-1]
            h_next = jnp.concatenate([h[:, 1:], zero], axis=1) * mnext       # x[l+1]
            h3 = jnp.concatenate([h_prev, h, h_next], axis=0)                # (3*Cin, N)
            return jnp.dot(w_ref[...], h3, preferred_element_type=jnp.float32)

        idx = 0
        # conv0 -> (folded) BN -> ReLU   (Dropout = identity, eval mode)
        h = relu(conv3(x_ref[...], w_refs[idx])); idx += 1

        # residual blocks (BasicBlock: conv-bn-relu-conv-bn (+res) -relu)
        for ds in has_downsample:
            t = relu(conv3(h, w_refs[idx])); idx += 1
            if ds:
                res = conv3(h, w_refs[idx]); idx += 1     # k=3 downsample conv + BN
            else:
                res = h
            h = relu(conv3(t, w_refs[idx]) + res); idx += 1

        # adaptive average pool (L -> POOL_DIM), per stacked sample
        pool = pool_ref[...]                              # (L, POOL_DIM) box average
        n_batch = out_ref.shape[0]
        seq_len = pool_ref.shape[0]
        for b in range(n_batch):                          # static loop (2B = 4)
            out_ref[b] = jnp.dot(h[:, b * seq_len:(b + 1) * seq_len], pool,
                                 preferred_element_type=jnp.float32)

    return kernel


# ------------------------- kernel B: fused dense head -----------------------
def head_kernel(flat_ref, scvi_ref,
                w1_ref, b1_ref, w2_ref, b2_ref, w3_ref, b3_ref,
                ws_ref, bs_ref,
                g1_ref, gb1_ref, g2_ref, gb2_ref, g3_ref, gb3_ref,
                out_ref, out2_ref):
    relu = lambda v: jnp.maximum(v, 0.0)

    def dense(x, w_ref, b_ref):
        return jnp.dot(x, w_ref[...], preferred_element_type=jnp.float32) + b_ref[...]

    # fc: Linear->ReLU->Linear->ReLU->Linear->ReLU (Dropout = identity)
    h = relu(dense(flat_ref[...], w1_ref, b1_ref))        # (2B, 256)
    h = relu(dense(h, w2_ref, b2_ref))                    # (2B, 128)
    h = relu(dense(h, w3_ref, b3_ref))                    # (2B, num_classes)

    b = scvi_ref.shape[0]
    out1 = h[:b]                                          # forward_dnase(x1)
    out2 = h[b:]                                          # forward_rna(x2)

    scvi_w = jnp.tanh(dense(scvi_ref[...], ws_ref, bs_ref))
    combined = jnp.concatenate([out1, out2, scvi_w], axis=1)   # (B, 3*num_classes)

    g = relu(dense(combined, g1_ref, gb1_ref))
    g = relu(dense(g, g2_ref, gb2_ref))
    out_ref[...] = relu(dense(g, g3_ref, gb3_ref))        # final ReLU per torch fc2
    out2_ref[...] = out2


# ------------------------------ parameters ----------------------------------
def init_params(key):
    keys = iter(jax.random.split(key, 64))
    bn_scale = 1.0 / math.sqrt(1.0 + BN_EPS)   # eval BN: gamma=1, beta=0, mean=0, var=1

    def conv_w_flat(cout, cin):
        # kaiming_normal_ fan_out, relu gain; torch layout (Cout, Cin, 3)
        fan_out = cout * 3
        w = jax.random.normal(next(keys), (cout, cin, 3), jnp.float32)
        w = w * math.sqrt(2.0 / fan_out)
        # fold BN scale; flatten taps: w_flat[co, k*cin + ci] = w[co, ci, k]
        return jnp.transpose(w, (0, 2, 1)).reshape(cout, 3 * cin) * bn_scale

    def lin(fin, fout):
        limit = math.sqrt(6.0 / (fin + fout))  # xavier_uniform
        w = jax.random.uniform(next(keys), (fin, fout), jnp.float32, -limit, limit)
        b = jnp.full((1, fout), 0.01, jnp.float32)
        return w, b

    p = {"w0": conv_w_flat(INIT_CONV, IN_CHANNELS)}

    blocks = []
    in_c = INIT_CONV
    for i in range(len(LAYERS)):
        out_c = int(INIT_CONV * FILTER_RATE ** i)
        bp = {"wa": conv_w_flat(out_c, in_c)}
        if in_c != out_c:                      # downsample path (k=3 conv + BN)
            bp["wd"] = conv_w_flat(out_c, in_c)
        bp["wb"] = conv_w_flat(out_c, out_c)
        blocks.append(bp)
        in_c = out_c
    p["blocks"] = blocks

    # fc1 initialized at the torch shape (lin_size -> lin_size/2) but only the
    # first FLAT_DIM rows are ever multiplied by non-zero inputs -> slice them.
    fc1_w_full, p["fc1_b"] = lin(LIN_SIZE, LIN_SIZE // 2)
    p["fc1_w"] = fc1_w_full[:FLAT_DIM]
    p["fc2_w"], p["fc2_b"] = lin(LIN_SIZE // 2, LIN_SIZE // 4)
    p["fc3_w"], p["fc3_b"] = lin(LIN_SIZE // 4, NUM_CLASSES)

    p["scvi_w"], p["scvi_b"] = lin(NUM_CLASSES, NUM_CLASSES)

    p["g1_w"], p["g1_b"] = lin(NUM_CLASSES * 3, NUM_CLASSES * 2)
    p["g2_w"], p["g2_b"] = lin(NUM_CLASSES * 2, NUM_CLASSES)
    p["g3_w"], p["g3_b"] = lin(NUM_CLASSES, OUT_DIM)
    return p


# ------------------------------ model forward --------------------------------
def _conv_masks(n_batch, seq_len):
    pos = jnp.arange(n_batch * seq_len) % seq_len
    mprev = (pos != 0).astype(jnp.float32).reshape(1, -1)
    mnext = (pos != seq_len - 1).astype(jnp.float32).reshape(1, -1)
    return mprev, mnext


def _pool_matrix(seq_len, pool_dim):
    win = seq_len // pool_dim
    return ((jnp.arange(seq_len)[:, None] // win) ==
            jnp.arange(pool_dim)[None, :]).astype(jnp.float32) / float(win)


def resnet1d_forward(x1, x2, scvi, p):
    batch, cin, seq_len = x1.shape
    nb = 2 * batch

    # stack the two shared-weight branches along batch; (C, 2B*L) lane-dense layout
    xs = jnp.concatenate([x1, x2], axis=0)                        # (2B, 4, L)
    x_cl = jnp.transpose(xs, (1, 0, 2)).reshape(cin, nb * seq_len)

    mprev, mnext = _conv_masks(nb, seq_len)
    pool_mat = _pool_matrix(seq_len, POOL_DIM)

    conv_ws = [p["w0"]]
    has_ds = []
    for bp in p["blocks"]:
        has_ds.append("wd" in bp)
        conv_ws.append(bp["wa"])
        if "wd" in bp:
            conv_ws.append(bp["wd"])
        conv_ws.append(bp["wb"])

    c_last = p["blocks"][-1]["wb"].shape[0]
    pooled = pl.pallas_call(
        make_branch_kernel(tuple(has_ds)),
        out_shape=jax.ShapeDtypeStruct((nb, c_last, POOL_DIM), jnp.float32),
    )(x_cl, mprev, mnext, pool_mat, *conv_ws)

    # torch: out.view(B, -1) -> (2B, C_last*POOL_DIM); row-major collapse is free
    flat = pooled.reshape(nb, c_last * POOL_DIM)

    out, out2 = pl.pallas_call(
        head_kernel,
        out_shape=(jax.ShapeDtypeStruct((batch, OUT_DIM), jnp.float32),
                   jax.ShapeDtypeStruct((batch, NUM_CLASSES), jnp.float32)),
    )(flat, scvi,
      p["fc1_w"], p["fc1_b"], p["fc2_w"], p["fc2_b"], p["fc3_w"], p["fc3_b"],
      p["scvi_w"], p["scvi_b"],
      p["g1_w"], p["g1_b"], p["g2_w"], p["g2_b"], p["g3_w"], p["g3_b"])
    return out, out2


# ------------------------------------ main -----------------------------------
if __name__ == "__main__":
    key = jax.random.PRNGKey(0)
    k_p, k1, k2, k3 = jax.random.split(key, 4)

    params = init_params(k_p)
    x1 = jax.random.normal(k1, (BATCH, IN_CHANNELS, SEQ_LEN), jnp.float32)
    x2 = jax.random.normal(k2, (BATCH, IN_CHANNELS, SEQ_LEN), jnp.float32)
    scvi = jax.random.normal(k3, (BATCH, NUM_CLASSES), jnp.float32)

    fwd = jax.jit(resnet1d_forward)
    out, out2 = fwd(x1, x2, scvi, params)
    jax.block_until_ready((out, out2))

    assert out.shape == (BATCH, OUT_DIM)
    assert out2.shape == (BATCH, NUM_CLASSES)
    print("KERNEL_OK")
</pallas_src>

<mosaic_0001>
module attributes {stable_mosaic.version = 11 : i64} {
  func.func @kernel(%arg0: memref<4x256xf32, #tpu.memory_space<vmem>>, %arg1: memref<1x256xf32, #tpu.memory_space<vmem>>, %arg2: memref<1x256xf32, #tpu.memory_space<vmem>>, %arg3: memref<64x8xf32, #tpu.memory_space<vmem>>, %arg4: memref<8x12xf32, #tpu.memory_space<vmem>>, %arg5: memref<8x24xf32, #tpu.memory_space<vmem>>, %arg6: memref<8x24xf32, #tpu.memory_space<vmem>>, %arg7: memref<16x24xf32, #tpu.memory_space<vmem>>, %arg8: memref<16x24xf32, #tpu.memory_space<vmem>>, %arg9: memref<16x48xf32, #tpu.memory_space<vmem>>, %arg10: memref<32x48xf32, #tpu.memory_space<vmem>>, %arg11: memref<32x48xf32, #tpu.memory_space<vmem>>, %arg12: memref<32x96xf32, #tpu.memory_space<vmem>>, %arg13: memref<4x32x8xf32, #tpu.memory_space<vmem>>) attributes {dimension_semantics = [], scalar_prefetch = 0 : i64, scratch_operands = 0 : i64, tpu.core_type = #tpu.core_type<tc>} {
    %c0 = arith.constant 0 : index
    %c0_0 = arith.constant 0 : index
    %0 = vector.load %arg1[%c0, %c0_0] : memref<1x256xf32, #tpu.memory_space<vmem>>, vector<1x256xf32>
    %c0_1 = arith.constant 0 : index
    %c0_2 = arith.constant 0 : index
    %1 = vector.load %arg2[%c0_1, %c0_2] : memref<1x256xf32, #tpu.memory_space<vmem>>, vector<1x256xf32>
    %c0_3 = arith.constant 0 : index
    %c0_4 = arith.constant 0 : index
    %2 = vector.load %arg0[%c0_3, %c0_4] : memref<4x256xf32, #tpu.memory_space<vmem>>, vector<4x256xf32>
    %cst = arith.constant 0.000000e+00 : f32
    %3 = vector.broadcast %cst : f32 to vector<4x1xf32>
    %4 = vector.extract_strided_slice %2 {offsets = [0, 0], sizes = [4, 255], strides = [1, 1]} : vector<4x256xf32> to vector<4x255xf32>
    %5 = tpu.concatenate %3, %4 in 1 : vector<4x1xf32>, vector<4x255xf32> -> vector<4x256xf32>
    %6 = vector.broadcast %0 : vector<1x256xf32> to vector<4x256xf32>
    %7 = arith.mulf %5, %6 : vector<4x256xf32>
    %8 = vector.extract_strided_slice %2 {offsets = [0, 1], sizes = [4, 255], strides = [1, 1]} : vector<4x256xf32> to vector<4x255xf32>
    %9 = tpu.concatenate %8, %3 in 1 : vector<4x255xf32>, vector<4x1xf32> -> vector<4x256xf32>
    %10 = vector.broadcast %1 : vector<1x256xf32> to vector<4x256xf32>
    %11 = arith.mulf %9, %10 : vector<4x256xf32>
    %12 = tpu.concatenate %7, %2, %11 in 0 : vector<4x256xf32>, vector<4x256xf32>, vector<4x256xf32> -> vector<12x256xf32>
    %c0_5 = arith.constant 0 : index
    %c0_6 = arith.constant 0 : index
    %13 = vector.load %arg4[%c0_5, %c0_6] : memref<8x12xf32, #tpu.memory_space<vmem>>, vector<8x12xf32>
    %cst_7 = arith.constant dense<0.000000e+00> : vector<8x256xf32>
    %14 = tpu.matmul %13, %12, %cst_7 {dimension_numbers = #tpu.dot_dimension_numbers<[1], [0], [0], [1], [0, 0, 1, 1], [], []>} : vector<8x12xf32>, vector<12x256xf32>, vector<8x256xf32> -> vector<8x256xf32>
    %cst_8 = arith.constant 0.000000e+00 : f32
    %15 = vector.broadcast %cst_8 : f32 to vector<8x256xf32>
    %16 = arith.maximumf %14, %15 : vector<8x256xf32>
    %cst_9 = arith.constant 0.000000e+00 : f32
    %17 = vector.broadcast %cst_9 : f32 to vector<8x1xf32>
    %18 = vector.extract_strided_slice %16 {offsets = [0, 0], sizes = [8, 255], strides = [1, 1]} : vector<8x256xf32> to vector<8x255xf32>
    %19 = tpu.concatenate %17, %18 in 1 : vector<8x1xf32>, vector<8x255xf32> -> vector<8x256xf32>
    %20 = vector.broadcast %0 : vector<1x256xf32> to vector<8x256xf32>
    %21 = arith.mulf %19, %20 : vector<8x256xf32>
    %22 = vector.extract_strided_slice %16 {offsets = [0, 1], sizes = [8, 255], strides = [1, 1]} : vector<8x256xf32> to vector<8x255xf32>
    %23 = tpu.concatenate %22, %17 in 1 : vector<8x255xf32>, vector<8x1xf32> -> vector<8x256xf32>
    %24 = vector.broadcast %1 : vector<1x256xf32> to vector<8x256xf32>
    %25 = arith.mulf %23, %24 : vector<8x256xf32>
    %26 = tpu.concatenate %21, %16, %25 in 0 : vector<8x256xf32>, vector<8x256xf32>, vector<8x256xf32> -> vector<24x256xf32>
    %c0_10 = arith.constant 0 : index
    %c0_11 = arith.constant 0 : index
    %27 = vector.load %arg5[%c0_10, %c0_11] : memref<8x24xf32, #tpu.memory_space<vmem>>, vector<8x24xf32>
    %cst_12 = arith.constant dense<0.000000e+00> : vector<8x256xf32>
    %28 = tpu.matmul %27, %26, %cst_12 {dimension_numbers = #tpu.dot_dimension_numbers<[1], [0], [0], [1], [0, 0, 1, 1], [], []>} : vector<8x24xf32>, vector<24x256xf32>, vector<8x256xf32> -> vector<8x256xf32>
    %cst_13 = arith.constant 0.000000e+00 : f32
    %29 = vector.broadcast %cst_13 : f32 to vector<8x256xf32>
    %30 = arith.maximumf %28, %29 : vector<8x256xf32>
    %cst_14 = arith.constant 0.000000e+00 : f32
    %31 = vector.broadcast %cst_14 : f32 to vector<8x1xf32>
    %32 = vector.extract_strided_slice %30 {offsets = [0, 0], sizes = [8, 255], strides = [1, 1]} : vector<8x256xf32> to vector<8x255xf32>
    %33 = tpu.concatenate %31, %32 in 1 : vector<8x1xf32>, vector<8x255xf32> -> vector<8x256xf32>
    %34 = vector.broadcast %0 : vector<1x256xf32> to vector<8x256xf32>
    %35 = arith.mulf %33, %34 : vector<8x256xf32>
    %36 = vector.extract_strided_slice %30 {offsets = [0, 1], sizes = [8, 255], strides = [1, 1]} : vector<8x256xf32> to vector<8x255xf32>
    %37 = tpu.concatenate %36, %31 in 1 : vector<8x255xf32>, vector<8x1xf32> -> vector<8x256xf32>
    %38 = vector.broadcast %1 : vector<1x256xf32> to vector<8x256xf32>
    %39 = arith.mulf %37, %38 : vector<8x256xf32>
    %40 = tpu.concatenate %35, %30, %39 in 0 : vector<8x256xf32>, vector<8x256xf32>, vector<8x256xf32> -> vector<24x256xf32>
    %c0_15 = arith.constant 0 : index
    %c0_16 = arith.constant 0 : index
    %41 = vector.load %arg6[%c0_15, %c0_16] : memref<8x24xf32, #tpu.memory_space<vmem>>, vector<8x24xf32>
    %cst_17 = arith.constant dense<0.000000e+00> : vector<8x256xf32>
    %42 = tpu.matmul %41, %40, %cst_17 {dimension_numbers = #tpu.dot_dimension_numbers<[1], [0], [0], [1], [0, 0, 1, 1], [], []>} : vector<8x24xf32>, vector<24x256xf32>, vector<8x256xf32> -> vector<8x256xf32>
    %43 = arith.addf %42, %16 : vector<8x256xf32>
    %cst_18 = arith.constant 0.000000e+00 : f32
    %44 = vector.broadcast %cst_18 : f32 to vector<8x256xf32>
    %45 = arith.maximumf %43, %44 : vector<8x256xf32>
    %cst_19 = arith.constant 0.000000e+00 : f32
    %46 = vector.broadcast %cst_19 : f32 to vector<8x1xf32>
    %47 = vector.extract_strided_slice %45 {offsets = [0, 0], sizes = [8, 255], strides = [1, 1]} : vector<8x256xf32> to vector<8x255xf32>
    %48 = tpu.concatenate %46, %47 in 1 : vector<8x1xf32>, vector<8x255xf32> -> vector<8x256xf32>
    %49 = vector.broadcast %0 : vector<1x256xf32> to vector<8x256xf32>
    %50 = arith.mulf %48, %49 : vector<8x256xf32>
    %51 = vector.extract_strided_slice %45 {offsets = [0, 1], sizes = [8, 255], strides = [1, 1]} : vector<8x256xf32> to vector<8x255xf32>
    %52 = tpu.concatenate %51, %46 in 1 : vector<8x255xf32>, vector<8x1xf32> -> vector<8x256xf32>
    %53 = vector.broadcast %1 : vector<1x256xf32> to vector<8x256xf32>
    %54 = arith.mulf %52, %53 : vector<8x256xf32>
    %55 = tpu.concatenate %50, %45, %54 in 0 : vector<8x256xf32>, vector<8x256xf32>, vector<8x256xf32> -> vector<24x256xf32>
    %c0_20 = arith.constant 0 : index
    %c0_21 = arith.constant 0 : index
    %56 = vector.load %arg7[%c0_20, %c0_21] : memref<16x24xf32, #tpu.memory_space<vmem>>, vector<16x24xf32>
    %cst_22 = arith.constant dense<0.000000e+00> : vector<16x256xf32>
    %57 = tpu.matmul %56, %55, %cst_22 {dimension_numbers = #tpu.dot_dimension_numbers<[1], [0], [0], [1], [0, 0, 1, 1], [], []>} : vector<16x24xf32>, vector<24x256xf32>, vector<16x256xf32> -> vector<16x256xf32>
    %cst_23 = arith.constant 0.000000e+00 : f32
    %58 = vector.broadcast %cst_23 : f32 to vector<16x256xf32>
    %59 = arith.maximumf %57, %58 : vector<16x256xf32>
    %cst_24 = arith.constant 0.000000e+00 : f32
    %60 = vector.broadcast %cst_24 : f32 to vector<8x1xf32>
    %61 = vector.extract_strided_slice %45 {offsets = [0, 0], sizes = [8, 255], strides = [1, 1]} : vector<8x256xf32> to vector<8x255xf32>
    %62 = tpu.concatenate %60, %61 in 1 : vector<8x1xf32>, vector<8x255xf32> -> vector<8x256xf32>
    %63 = vector.broadcast %0 : vector<1x256xf32> to vector<8x256xf32>
    %64 = arith.mulf %62, %63 : vector<8x256xf32>
    %65 = vector.extract_strided_slice %45 {offsets = [0, 1], sizes = [8, 255], strides = [1, 1]} : vector<8x256xf32> to vector<8x255xf32>
    %66 = tpu.concatenate %65, %60 in 1 : vector<8x255xf32>, vector<8x1xf32> -> vector<8x256xf32>
    %67 = vector.broadcast %1 : vector<1x256xf32> to vector<8x256xf32>
    %68 = arith.mulf %66, %67 : vector<8x256xf32>
    %69 = tpu.concatenate %64, %45, %68 in 0 : vector<8x256xf32>, vector<8x256xf32>, vector<8x256xf32> -> vector<24x256xf32>
    %c0_25 = arith.constant 0 : index
    %c0_26 = arith.constant 0 : index
    %70 = vector.load %arg8[%c0_25, %c0_26] : memref<16x24xf32, #tpu.memory_space<vmem>>, vector<16x24xf32>
    %cst_27 = arith.constant dense<0.000000e+00> : vector<16x256xf32>
    %71 = tpu.matmul %70, %69, %cst_27 {dimension_numbers = #tpu.dot_dimension_numbers<[1], [0], [0], [1], [0, 0, 1, 1], [], []>} : vector<16x24xf32>, vector<24x256xf32>, vector<16x256xf32> -> vector<16x256xf32>
    %cst_28 = arith.constant 0.000000e+00 : f32
    %72 = vector.broadcast %cst_28 : f32 to vector<16x1xf32>
    %73 = vector.extract_strided_slice %59 {offsets = [0, 0], sizes = [16, 255], strides = [1, 1]} : vector<16x256xf32> to vector<16x255xf32>
    %74 = tpu.concatenate %72, %73 in 1 : vector<16x1xf32>, vector<16x255xf32> -> vector<16x256xf32>
    %75 = vector.broadcast %0 : vector<1x256xf32> to vector<16x256xf32>
    %76 = arith.mulf %74, %75 : vector<16x256xf32>
    %77 = vector.extract_strided_slice %59 {offsets = [0, 1], sizes = [16, 255], strides = [1, 1]} : vector<16x256xf32> to vector<16x255xf32>
    %78 = tpu.concatenate %77, %72 in 1 : vector<16x255xf32>, vector<16x1xf32> -> vector<16x256xf32>
    %79 = vector.broadcast %1 : vector<1x256xf32> to vector<16x256xf32>
    %80 = arith.mulf %78, %79 : vector<16x256xf32>
    %81 = tpu.concatenate %76, %59, %80 in 0 : vector<16x256xf32>, vector<16x256xf32>, vector<16x256xf32> -> vector<48x256xf32>
    %c0_29 = arith.constant 0 : index
    %c0_30 = arith.constant 0 : index
    %82 = vector.load %arg9[%c0_29, %c0_30] : memref<16x48xf32, #tpu.memory_space<vmem>>, vector<16x48xf32>
    %cst_31 = arith.constant dense<0.000000e+00> : vector<16x256xf32>
    %83 = tpu.matmul %82, %81, %cst_31 {dimension_numbers = #tpu.dot_dimension_numbers<[1], [0], [0], [1], [0, 0, 1, 1], [], []>} : vector<16x48xf32>, vector<48x256xf32>, vector<16x256xf32> -> vector<16x256xf32>
    %84 = arith.addf %83, %71 : vector<16x256xf32>
    %cst_32 = arith.constant 0.000000e+00 : f32
    %85 = vector.broadcast %cst_32 : f32 to vector<16x256xf32>
    %86 = arith.maximumf %84, %85 : vector<16x256xf32>
    %cst_33 = arith.constant 0.000000e+00 : f32
    %87 = vector.broadcast %cst_33 : f32 to vector<16x1xf32>
    %88 = vector.extract_strided_slice %86 {offsets = [0, 0], sizes = [16, 255], strides = [1, 1]} : vector<16x256xf32> to vector<16x255xf32>
    %89 = tpu.concatenate %87, %88 in 1 : vector<16x1xf32>, vector<16x255xf32> -> vector<16x256xf32>
    %90 = vector.broadcast %0 : vector<1x256xf32> to vector<16x256xf32>
    %91 = arith.mulf %89, %90 : vector<16x256xf32>
    %92 = vector.extract_strided_slice %86 {offsets = [0, 1], sizes = [16, 255], strides = [1, 1]} : vector<16x256xf32> to vector<16x255xf32>
    %93 = tpu.concatenate %92, %87 in 1 : vector<16x255xf32>, vector<16x1xf32> -> vector<16x256xf32>
    %94 = vector.broadcast %1 : vector<1x256xf32> to vector<16x256xf32>
    %95 = arith.mulf %93, %94 : vector<16x256xf32>
    %96 = tpu.concatenate %91, %86, %95 in 0 : vector<16x256xf32>, vector<16x256xf32>, vector<16x256xf32> -> vector<48x256xf32>
    %c0_34 = arith.constant 0 : index
    %c0_35 = arith.constant 0 : index
    %97 = vector.load %arg10[%c0_34, %c0_35] : memref<32x48xf32, #tpu.memory_space<vmem>>, vector<32x48xf32>
    %cst_36 = arith.constant dense<0.000000e+00> : vector<32x256xf32>
    %98 = tpu.matmul %97, %96, %cst_36 {dimension_numbers = #tpu.dot_dimension_numbers<[1], [0], [0], [1], [0, 0, 1, 1], [], []>} : vector<32x48xf32>, vector<48x256xf32>, vector<32x256xf32> -> vector<32x256xf32>
    %cst_37 = arith.constant 0.000000e+00 : f32
    %99 = vector.broadcast %cst_37 : f32 to vector<32x256xf32>
    %100 = arith.maximumf %98, %99 : vector<32x256xf32>
    %cst_38 = arith.constant 0.000000e+00 : f32
    %101 = vector.broadcast %cst_38 : f32 to vector<16x1xf32>
    %102 = vector.extract_strided_slice %86 {offsets = [0, 0], sizes = [16, 255], strides = [1, 1]} : vector<16x256xf32> to vector<16x255xf32>
    %103 = tpu.concatenate %101, %102 in 1 : vector<16x1xf32>, vector<16x255xf32> -> vector<16x256xf32>
    %104 = vector.broadcast %0 : vector<1x256xf32> to vector<16x256xf32>
    %105 = arith.mulf %103, %104 : vector<16x256xf32>
    %106 = vector.extract_strided_slice %86 {offsets = [0, 1], sizes = [16, 255], strides = [1, 1]} : vector<16x256xf32> to vector<16x255xf32>
    %107 = tpu.concatenate %106, %101 in 1 : vector<16x255xf32>, vector<16x1xf32> -> vector<16x256xf32>
    %108 = vector.broadcast %1 : vector<1x256xf32> to vector<16x256xf32>
    %109 = arith.mulf %107, %108 : vector<16x256xf32>
    %110 = tpu.concatenate %105, %86, %109 in 0 : vector<16x256xf32>, vector<16x256xf32>, vector<16x256xf32> -> vector<48x256xf32>
    %c0_39 = arith.constant 0 : index
    %c0_40 = arith.constant 0 : index
    %111 = vector.load %arg11[%c0_39, %c0_40] : memref<32x48xf32, #tpu.memory_space<vmem>>, vector<32x48xf32>
    %cst_41 = arith.constant dense<0.000000e+00> : vector<32x256xf32>
    %112 = tpu.matmul %111, %110, %cst_41 {dimension_numbers = #tpu.dot_dimension_numbers<[1], [0], [0], [1], [0, 0, 1, 1], [], []>} : vector<32x48xf32>, vector<48x256xf32>, vector<32x256xf32> -> vector<32x256xf32>
    %cst_42 = arith.constant 0.000000e+00 : f32
    %113 = vector.broadcast %cst_42 : f32 to vector<32x1xf32>
    %114 = vector.extract_strided_slice %100 {offsets = [0, 0], sizes = [32, 255], strides = [1, 1]} : vector<32x256xf32> to vector<32x255xf32>
    %115 = tpu.concatenate %113, %114 in 1 : vector<32x1xf32>, vector<32x255xf32> -> vector<32x256xf32>
    %116 = vector.broadcast %0 : vector<1x256xf32> to vector<32x256xf32>
    %117 = arith.mulf %115, %116 : vector<32x256xf32>
    %118 = vector.extract_strided_slice %100 {offsets = [0, 1], sizes = [32, 255], strides = [1, 1]} : vector<32x256xf32> to vector<32x255xf32>
    %119 = tpu.concatenate %118, %113 in 1 : vector<32x255xf32>, vector<32x1xf32> -> vector<32x256xf32>
    %120 = vector.broadcast %1 : vector<1x256xf32> to vector<32x256xf32>
    %121 = arith.mulf %119, %120 : vector<32x256xf32>
    %122 = tpu.concatenate %117, %100, %121 in 0 : vector<32x256xf32>, vector<32x256xf32>, vector<32x256xf32> -> vector<96x256xf32>
    %c0_43 = arith.constant 0 : index
    %c0_44 = arith.constant 0 : index
    %123 = vector.load %arg12[%c0_43, %c0_44] : memref<32x96xf32, #tpu.memory_space<vmem>>, vector<32x96xf32>
    %cst_45 = arith.constant dense<0.000000e+00> : vector<32x256xf32>
    %124 = tpu.matmul %123, %122, %cst_45 {dimension_numbers = #tpu.dot_dimension_numbers<[1], [0], [0], [1], [0, 0, 1, 1], [], []>} : vector<32x96xf32>, vector<96x256xf32>, vector<32x256xf32> -> vector<32x256xf32>
    %125 = arith.addf %124, %112 : vector<32x256xf32>
    %cst_46 = arith.constant 0.000000e+00 : f32
    %126 = vector.broadcast %cst_46 : f32 to vector<32x256xf32>
    %127 = arith.maximumf %125, %126 : vector<32x256xf32>
    %c0_47 = arith.constant 0 : index
    %c0_48 = arith.constant 0 : index
    %128 = vector.load %arg3[%c0_47, %c0_48] : memref<64x8xf32, #tpu.memory_space<vmem>>, vector<64x8xf32>
    %129 = vector.extract_strided_slice %127 {offsets = [0, 0], sizes = [32, 64], strides = [1, 1]} : vector<32x256xf32> to vector<32x64xf32>
    %cst_49 = arith.constant dense<0.000000e+00> : vector<32x8xf32>
    %130 = tpu.matmul %129, %128, %cst_49 {dimension_numbers = #tpu.dot_dimension_numbers<[1], [0], [0], [1], [0, 0, 1, 1], [], []>} : vector<32x64xf32>, vector<64x8xf32>, vector<32x8xf32> -> vector<32x8xf32>
    %c0_50 = arith.constant 0 : index
    %c0_51 = arith.constant 0 : index
    %c0_52 = arith.constant 0 : index
    %131 = vector.load %arg13[%c0_50, %c0_51, %c0_52] : memref<4x32x8xf32, #tpu.memory_space<vmem>>, vector<1x32x8xf32>
    %132 = vector.shape_cast %131 : vector<1x32x8xf32> to vector<32x8xf32>
    %133 = vector.shape_cast %130 : vector<32x8xf32> to vector<1x32x8xf32>
    tpu.vector_store %arg13[%c0_50, %c0_51, %c0_52], %133 {strides = array<i32>} : memref<4x32x8xf32, #tpu.memory_space<vmem>>, vector<1x32x8xf32>,
    %134 = vector.extract_strided_slice %127 {offsets = [0, 64], sizes = [32, 64], strides = [1, 1]} : vector<32x256xf32> to vector<32x64xf32>
    %cst_53 = arith.constant dense<0.000000e+00> : vector<32x8xf32>
    %135 = tpu.matmul %134, %128, %cst_53 {dimension_numbers = #tpu.dot_dimension_numbers<[1], [0], [0], [1], [0, 0, 1, 1], [], []>} : vector<32x64xf32>, vector<64x8xf32>, vector<32x8xf32> -> vector<32x8xf32>
    %c1 = arith.constant 1 : index
    %c0_54 = arith.constant 0 : index
    %c0_55 = arith.constant 0 : index
    %136 = vector.load %arg13[%c1, %c0_54, %c0_55] : memref<4x32x8xf32, #tpu.memory_space<vmem>>, vector<1x32x8xf32>
    %137 = vector.shape_cast %136 : vector<1x32x8xf32> to vector<32x8xf32>
    %138 = vector.shape_cast %135 : vector<32x8xf32> to vector<1x32x8xf32>
    tpu.vector_store %arg13[%c1, %c0_54, %c0_55], %138 {strides = array<i32>} : memref<4x32x8xf32, #tpu.memory_space<vmem>>, vector<1x32x8xf32>,
    %139 = vector.extract_strided_slice %127 {offsets = [0, 128], sizes = [32, 64], strides = [1, 1]} : vector<32x256xf32> to vector<32x64xf32>
    %cst_56 = arith.constant dense<0.000000e+00> : vector<32x8xf32>
    %140 = tpu.matmul %139, %128, %cst_56 {dimension_numbers = #tpu.dot_dimension_numbers<[1], [0], [0], [1], [0, 0, 1, 1], [], []>} : vector<32x64xf32>, vector<64x8xf32>, vector<32x8xf32> -> vector<32x8xf32>
    %c2 = arith.constant 2 : index
    %c0_57 = arith.constant 0 : index
    %c0_58 = arith.constant 0 : index
    %141 = vector.load %arg13[%c2, %c0_57, %c0_58] : memref<4x32x8xf32, #tpu.memory_space<vmem>>, vector<1x32x8xf32>
    %142 = vector.shape_cast %141 : vector<1x32x8xf32> to vector<32x8xf32>
    %143 = vector.shape_cast %140 : vector<32x8xf32> to vector<1x32x8xf32>
    tpu.vector_store %arg13[%c2, %c0_57, %c0_58], %143 {strides = array<i32>} : memref<4x32x8xf32, #tpu.memory_space<vmem>>, vector<1x32x8xf32>,
    %144 = vector.extract_strided_slice %127 {offsets = [0, 192], sizes = [32, 64], strides = [1, 1]} : vector<32x256xf32> to vector<32x64xf32>
    %cst_59 = arith.constant dense<0.000000e+00> : vector<32x8xf32>
    %145 = tpu.matmul %144, %128, %cst_59 {dimension_numbers = #tpu.dot_dimension_numbers<[1], [0], [0], [1], [0, 0, 1, 1], [], []>} : vector<32x64xf32>, vector<64x8xf32>, vector<32x8xf32> -> vector<32x8xf32>
    %c3 = arith.constant 3 : index
    %c0_60 = arith.constant 0 : index
    %c0_61 = arith.constant 0 : index
    %146 = vector.load %arg13[%c3, %c0_60, %c0_61] : memref<4x32x8xf32, #tpu.memory_space<vmem>>, vector<1x32x8xf32>
    %147 = vector.shape_cast %146 : vector<1x32x8xf32> to vector<32x8xf32>
    %148 = vector.shape_cast %145 : vector<32x8xf32> to vector<1x32x8xf32>
    tpu.vector_store %arg13[%c3, %c0_60, %c0_61], %148 {strides = array<i32>} : memref<4x32x8xf32, #tpu.memory_space<vmem>>, vector<1x32x8xf32>,
    return
  }
}

module attributes {stable_mosaic.version = 11 : i64} {
  func.func @head_kernel(%arg0: memref<4x256xf32, #tpu.memory_space<vmem>>, %arg1: memref<2x8xf32, #tpu.memory_space<vmem>>, %arg2: memref<256x256xf32, #tpu.memory_space<vmem>>, %arg3: memref<1x256xf32, #tpu.memory_space<vmem>>, %arg4: memref<256x128xf32, #tpu.memory_space<vmem>>, %arg5: memref<1x128xf32, #tpu.memory_space<vmem>>, %arg6: memref<128x8xf32, #tpu.memory_space<vmem>>, %arg7: memref<1x8xf32, #tpu.memory_space<vmem>>, %arg8: memref<8x8xf32, #tpu.memory_space<vmem>>, %arg9: memref<1x8xf32, #tpu.memory_space<vmem>>, %arg10: memref<24x16xf32, #tpu.memory_space<vmem>>, %arg11: memref<1x16xf32, #tpu.memory_space<vmem>>, %arg12: memref<16x8xf32, #tpu.memory_space<vmem>>, %arg13: memref<1x8xf32, #tpu.memory_space<vmem>>, %arg14: memref<8x2xf32, #tpu.memory_space<vmem>>, %arg15: memref<1x2xf32, #tpu.memory_space<vmem>>, %arg16: memref<2x2xf32, #tpu.memory_space<vmem>>, %arg17: memref<2x8xf32, #tpu.memory_space<vmem>>) attributes {dimension_semantics = [], scalar_prefetch = 0 : i64, scratch_operands = 0 : i64, tpu.core_type = #tpu.core_type<tc>} {
    %c0 = arith.constant 0 : index
    %c0_0 = arith.constant 0 : index
    %0 = vector.load %arg0[%c0, %c0_0] : memref<4x256xf32, #tpu.memory_space<vmem>>, vector<4x256xf32>
    %c0_1 = arith.constant 0 : index
    %c0_2 = arith.constant 0 : index
    %1 = vector.load %arg2[%c0_1, %c0_2] : memref<256x256xf32, #tpu.memory_space<vmem>>, vector<256x256xf32>
    %cst = arith.constant dense<0.000000e+00> : vector<4x256xf32>
    %2 = tpu.matmul %0, %1, %cst {dimension_numbers = #tpu.dot_dimension_numbers<[1], [0], [0], [1], [0, 0, 1, 1], [], []>} : vector<4x256xf32>, vector<256x256xf32>, vector<4x256xf32> -> vector<4x256xf32>
    %c0_3 = arith.constant 0 : index
    %c0_4 = arith.constant 0 : index
    %3 = vector.load %arg3[%c0_3, %c0_4] : memref<1x256xf32, #tpu.memory_space<vmem>>, vector<1x256xf32>
    %4 = vector.broadcast %3 : vector<1x256xf32> to vector<4x256xf32>
    %5 = arith.addf %2, %4 : vector<4x256xf32>
    %cst_5 = arith.constant 0.000000e+00 : f32
    %6 = vector.broadcast %cst_5 : f32 to vector<4x256xf32>
    %7 = arith.maximumf %5, %6 : vector<4x256xf32>
    %c0_6 = arith.constant 0 : index
    %c0_7 = arith.constant 0 : index
    %8 = vector.load %arg4[%c0_6, %c0_7] : memref<256x128xf32, #tpu.memory_space<vmem>>, vector<256x128xf32>
    %cst_8 = arith.constant dense<0.000000e+00> : vector<4x128xf32>
    %9 = tpu.matmul %7, %8, %cst_8 {dimension_numbers = #tpu.dot_dimension_numbers<[1], [0], [0], [1], [0, 0, 1, 1], [], []>} : vector<4x256xf32>, vector<256x128xf32>, vector<4x128xf32> -> vector<4x128xf32>
    %c0_9 = arith.constant 0 : index
    %c0_10 = arith.constant 0 : index
    %10 = vector.load %arg5[%c0_9, %c0_10] : memref<1x128xf32, #tpu.memory_space<vmem>>, vector<1x128xf32>
    %11 = vector.broadcast %10 : vector<1x128xf32> to vector<4x128xf32>
    %12 = arith.addf %9, %11 : vector<4x128xf32>
    %cst_11 = arith.constant 0.000000e+00 : f32
    %13 = vector.broadcast %cst_11 : f32 to vector<4x128xf32>
    %14 = arith.maximumf %12, %13 : vector<4x128xf32>
    %c0_12 = arith.constant 0 : index
    %c0_13 = arith.constant 0 : index
    %15 = vector.load %arg6[%c0_12, %c0_13] : memref<128x8xf32, #tpu.memory_space<vmem>>, vector<128x8xf32>
    %cst_14 = arith.constant dense<0.000000e+00> : vector<4x8xf32>
    %16 = tpu.matmul %14, %15, %cst_14 {dimension_numbers = #tpu.dot_dimension_numbers<[1], [0], [0], [1], [0, 0, 1, 1], [], []>} : vector<4x128xf32>, vector<128x8xf32>, vector<4x8xf32> -> vector<4x8xf32>
    %c0_15 = arith.constant 0 : index
    %c0_16 = arith.constant 0 : index
    %17 = vector.load %arg7[%c0_15, %c0_16] : memref<1x8xf32, #tpu.memory_space<vmem>>, vector<1x8xf32>
    %18 = vector.broadcast %17 : vector<1x8xf32> to vector<4x8xf32>
    %19 = arith.addf %16, %18 : vector<4x8xf32>
    %cst_17 = arith.constant 0.000000e+00 : f32
    %20 = vector.broadcast %cst_17 : f32 to vector<4x8xf32>
    %21 = arith.maximumf %19, %20 : vector<4x8xf32>
    %22 = vector.extract_strided_slice %21 {offsets = [0, 0], sizes = [2, 8], strides = [1, 1]} : vector<4x8xf32> to vector<2x8xf32>
    %23 = vector.extract_strided_slice %21 {offsets = [2, 0], sizes = [2, 8], strides = [1, 1]} : vector<4x8xf32> to vector<2x8xf32>
    %c0_18 = arith.constant 0 : index
    %c0_19 = arith.constant 0 : index
    %24 = vector.load %arg1[%c0_18, %c0_19] : memref<2x8xf32, #tpu.memory_space<vmem>>, vector<2x8xf32>
    %c0_20 = arith.constant 0 : index
    %c0_21 = arith.constant 0 : index
    %25 = vector.load %arg8[%c0_20, %c0_21] : memref<8x8xf32, #tpu.memory_space<vmem>>, vector<8x8xf32>
    %cst_22 = arith.constant dense<0.000000e+00> : vector<2x8xf32>
    %26 = tpu.matmul %24, %25, %cst_22 {dimension_numbers = #tpu.dot_dimension_numbers<[1], [0], [0], [1], [0, 0, 1, 1], [], []>} : vector<2x8xf32>, vector<8x8xf32>, vector<2x8xf32> -> vector<2x8xf32>
    %c0_23 = arith.constant 0 : index
    %c0_24 = arith.constant 0 : index
    %27 = vector.load %arg9[%c0_23, %c0_24] : memref<1x8xf32, #tpu.memory_space<vmem>>, vector<1x8xf32>
    %28 = vector.broadcast %27 : vector<1x8xf32> to vector<2x8xf32>
    %29 = arith.addf %26, %28 : vector<2x8xf32>
    %30 = math.tanh %29 : vector<2x8xf32>
    %31 = tpu.concatenate %22, %23, %30 in 1 : vector<2x8xf32>, vector<2x8xf32>, vector<2x8xf32> -> vector<2x24xf32>
    %c0_25 = arith.constant 0 : index
    %c0_26 = arith.constant 0 : index
    %32 = vector.load %arg10[%c0_25, %c0_26] : memref<24x16xf32, #tpu.memory_space<vmem>>, vector<24x16xf32>
    %cst_27 = arith.constant dense<0.000000e+00> : vector<2x16xf32>
    %33 = tpu.matmul %31, %32, %cst_27 {dimension_numbers = #tpu.dot_dimension_numbers<[1], [0], [0], [1], [0, 0, 1, 1], [], []>} : vector<2x24xf32>, vector<24x16xf32>, vector<2x16xf32> -> vector<2x16xf32>
    %c0_28 = arith.constant 0 : index
    %c0_29 = arith.constant 0 : index
    %34 = vector.load %arg11[%c0_28, %c0_29] : memref<1x16xf32, #tpu.memory_space<vmem>>, vector<1x16xf32>
    %35 = vector.broadcast %34 : vector<1x16xf32> to vector<2x16xf32>
    %36 = arith.addf %33, %35 : vector<2x16xf32>
    %cst_30 = arith.constant 0.000000e+00 : f32
    %37 = vector.broadcast %cst_30 : f32 to vector<2x16xf32>
    %38 = arith.maximumf %36, %37 : vector<2x16xf32>
    %c0_31 = arith.constant 0 : index
    %c0_32 = arith.constant 0 : index
    %39 = vector.load %arg12[%c0_31, %c0_32] : memref<16x8xf32, #tpu.memory_space<vmem>>, vector<16x8xf32>
    %cst_33 = arith.constant dense<0.000000e+00> : vector<2x8xf32>
    %40 = tpu.matmul %38, %39, %cst_33 {dimension_numbers = #tpu.dot_dimension_numbers<[1], [0], [0], [1], [0, 0, 1, 1], [], []>} : vector<2x16xf32>, vector<16x8xf32>, vector<2x8xf32> -> vector<2x8xf32>
    %c0_34 = arith.constant 0 : index
    %c0_35 = arith.constant 0 : index
    %41 = vector.load %arg13[%c0_34, %c0_35] : memref<1x8xf32, #tpu.memory_space<vmem>>, vector<1x8xf32>
    %42 = vector.broadcast %41 : vector<1x8xf32> to vector<2x8xf32>
    %43 = arith.addf %40, %42 : vector<2x8xf32>
    %cst_36 = arith.constant 0.000000e+00 : f32
    %44 = vector.broadcast %cst_36 : f32 to vector<2x8xf32>
    %45 = arith.maximumf %43, %44 : vector<2x8xf32>
    %c0_37 = arith.constant 0 : index
    %c0_38 = arith.constant 0 : index
    %46 = vector.load %arg14[%c0_37, %c0_38] : memref<8x2xf32, #tpu.memory_space<vmem>>, vector<8x2xf32>
    %cst_39 = arith.constant dense<0.000000e+00> : vector<2x2xf32>
    %47 = tpu.matmul %45, %46, %cst_39 {dimension_numbers = #tpu.dot_dimension_numbers<[1], [0], [0], [1], [0, 0, 1, 1], [], []>} : vector<2x8xf32>, vector<8x2xf32>, vector<2x2xf32> -> vector<2x2xf32>
    %c0_40 = arith.constant 0 : index
    %c0_41 = arith.constant 0 : index
    %48 = vector.load %arg15[%c0_40, %c0_41] : memref<1x2xf32, #tpu.memory_space<vmem>>, vector<1x2xf32>
    %49 = vector.broadcast %48 : vector<1x2xf32> to vector<2x2xf32>
    %50 = arith.addf %47, %49 : vector<2x2xf32>
    %cst_42 = arith.constant 0.000000e+00 : f32
    %51 = vector.broadcast %cst_42 : f32 to vector<2x2xf32>
    %52 = arith.maximumf %50, %51 : vector<2x2xf32>
    %c0_43 = arith.constant 0 : index
    %c0_44 = arith.constant 0 : index
    %53 = vector.load %arg16[%c0_43, %c0_44] : memref<2x2xf32, #tpu.memory_space<vmem>>, vector<2x2xf32>
    tpu.vector_store %arg16[%c0_43, %c0_44], %52 {strides = array<i32>} : memref<2x2xf32, #tpu.memory_space<vmem>>, vector<2x2xf32>,
    %c0_45 = arith.constant 0 : index
    %c0_46 = arith.constant 0 : index
    %54 = vector.load %arg17[%c0_45, %c0_46] : memref<2x8xf32, #tpu.memory_space<vmem>>, vector<2x8xf32>
    tpu.vector_store %arg17[%c0_45, %c0_46], %23 {strides = array<i32>} : memref<2x8xf32, #tpu.memory_space<vmem>>, vector<2x8xf32>,
    return
  }
}

</mosaic_0001>

<llo_original>
// kernel: resnet1d_forward.3
$region0: #{resnet1d_forward.3}
  #allocation0 [shape = 'u32[]', space=smem, size = 0x4, offset = 0x4, fixed_abs, tag = 'smem constant byte address 0x4 - core index']
  #allocation1 [shape = 'u32[144,128]{1,0:T(1,128)}', space=vmem, size = 0x12000, scoped, tag = 'internal scratch']
  %s0 = inlined_call_operand.vmem [shape: f32[4,256], index: 0, kind: input, shape index: {}]
  %s1 = inlined_call_operand.vmem [shape: f32[2,8], index: 1, kind: input, shape index: {}]
  %s2 = inlined_call_operand.vmem [shape: f32[256,256], index: 2, kind: input, shape index: {}]
  %s3 = inlined_call_operand.hbm [shape: f32[1,256], index: 3, kind: input, shape index: {}]
  %s4 = inlined_call_operand.vmem [shape: f32[256,128], index: 4, kind: input, shape index: {}]
  %s5 = inlined_call_operand.hbm [shape: f32[1,128], index: 5, kind: input, shape index: {}]
  %s6 = inlined_call_operand.vmem [shape: f32[128,8], index: 6, kind: input, shape index: {}]
  %s7 = inlined_call_operand.hbm [shape: f32[1,8], index: 7, kind: input, shape index: {}]
  %s8 = inlined_call_operand.vmem [shape: f32[8,8], index: 8, kind: input, shape index: {}]
  %s9 = inlined_call_operand.hbm [shape: f32[1,8], index: 9, kind: input, shape index: {}]
  %s10 = inlined_call_operand.vmem [shape: f32[24,16], index: 10, kind: input, shape index: {}]
  %s11 = inlined_call_operand.hbm [shape: f32[1,16], index: 11, kind: input, shape index: {}]
  %s12 = inlined_call_operand.vmem [shape: f32[16,8], index: 12, kind: input, shape index: {}]
  %s13 = inlined_call_operand.hbm [shape: f32[1,8], index: 13, kind: input, shape index: {}]
  %s14 = inlined_call_operand.vmem [shape: f32[8,2], index: 14, kind: input, shape index: {}]
  %s15 = inlined_call_operand.hbm [shape: f32[1,2], index: 15, kind: input, shape index: {}]
  %s16 = inlined_call_operand.hbm [shape: f32[2,2], index: 16, kind: output, shape index: {0}]
  %s17 = inlined_call_operand.hbm [shape: f32[2,8], index: 17, kind: output, shape index: {1}]
  %18 = xla_tuple %s16, %s17
  %s19 = sld [smem:[#allocation0]]
  $region110: #{resnet1d_forward.3} parent=0
    _
  %s21 = ssub.s32 1, %s19
  %s22 = scalar_select 0, %s21, %s19
  $region1: #{resnet1d_forward.3} parent=0
    #allocation2 [shape = 'u8[1024]{0}', space=vmem, size = 0x400, scoped, tag = 'input window, operand 3, single buffered']
    #allocation3 [shape = 's32[1]{0}', space=sflag, size = 0x4, scoped, tag = 'scoped memory for resnet1d_forward.3']
    #allocation4 [shape = 's32[1]{0}', space=sflag, size = 0x4, scoped, tag = 'scoped memory for resnet1d_forward.3']
    #allocation5 [shape = 'u8[512]{0}', space=vmem, size = 0x400, scoped, tag = 'input window, operand 5, single buffered']
    #allocation6 [shape = 's32[1]{0}', space=sflag, size = 0x4, scoped, tag = 'scoped memory for resnet1d_forward.3']
    #allocation7 [shape = 'u8[512]{0}', space=vmem, size = 0x400, scoped, tag = 'input window, operand 7, single buffered']
    #allocation8 [shape = 'u8[512]{0}', space=vmem, size = 0x400, scoped, tag = 'input window, operand 9, single buffered']
    #allocation9 [shape = 's32[1]{0}', space=sflag, size = 0x4, scoped, tag = 'scoped memory for resnet1d_forward.3']
    #allocation10 [shape = 'u8[512]{0}', space=vmem, size = 0x400, scoped, tag = 'input window, operand 11, single buffered']
    #allocation11 [shape = 'u8[512]{0}', space=vmem, size = 0x400, scoped, tag = 'input window, operand 13, single buffered']
    #allocation12 [shape = 's32[1]{0}', space=sflag, size = 0x4, scoped, tag = 'scoped memory for resnet1d_forward.3']
    #allocation13 [shape = 'u8[512]{0}', space=vmem, size = 0x400, scoped, tag = 'input window, operand 15, single buffered']
    #allocation14 [shape = 'u8[1024]{0}', space=vmem, size = 0x400, scoped, tag = 'output window, operand 0, single buffered']
    #allocation15 [shape = 'u8[1024]{0}', space=vmem, size = 0x400, scoped, tag = 'output window, operand 1, single buffered']
    #allocation16 [shape = 's32[1]{0}', space=sflag, size = 0x4, scoped, tag = 'scoped memory for resnet1d_forward.3']
    %23 = vsyncpa [#allocation3], 0
    %24 = vsyncpa [#allocation6], 0
    %25 = vsyncpa [#allocation9], 0
    %26 = vsyncpa [#allocation12], 0
    %27 = vsyncpa [#allocation4], 0
    %28 = vsyncpa [#allocation16], 0
    // Predicated region
    $region2: #{resnet1d_forward.3} parent=1 // pred_check
      _
    $region3: #{resnet1d_forward.3} parent=1 // pred_check_branch
      %30 = sbr.rel (0) target = $region5
    $region4: #{resnet1d_forward.3} parent=1 // pred_region
      _
    $region5: #{resnet1d_forward.3} parent=1 // pred_fallthru
      _
    // Predicated region
    $region6: #{resnet1d_forward.3} parent=1 // pred_check
      _
    $region7: #{resnet1d_forward.3} parent=1 // pred_check_branch
      %32 = sbr.rel (0) target = $region9
    $region8: #{resnet1d_forward.3} parent=1 // pred_region
      _
    $region9: #{resnet1d_forward.3} parent=1 // pred_fallthru
      _
    // Predicated region
    $region10: #{resnet1d_forward.3} parent=1 // pred_check
      _
    $region11: #{resnet1d_forward.3} parent=1 // pred_check_branch
      %34 = sbr.rel (0) target = $region13
    $region12: #{resnet1d_forward.3} parent=1 // pred_region
      _
    $region13: #{resnet1d_forward.3} parent=1 // pred_fallthru
      _
    // Predicated region
    $region14: #{resnet1d_forward.3} parent=1 // pred_check
      _
    $region15: #{resnet1d_forward.3} parent=1 // pred_check_branch
      %36 = sbr.rel (0) target = $region17
    $region16: #{resnet1d_forward.3} parent=1 // pred_region
      %s38 = ssub.s32 32, 32
      %39 = vsyncadd [#allocation3], %s38
      %s41 = sshll.u32 [#allocation2], 4
      %s42 = int_to_ptr.vmem [resolvable:$true] %s41
      %44 = dma.hbm_to_vmem [thread:$0]  %s3, 32, %s42, [#allocation3]
    $region17: #{resnet1d_forward.3} parent=1 // pred_fallthru
      _
    // Predicated region
    $region18: #{resnet1d_forward.3} parent=1 // pred_check
      _
    $region19: #{resnet1d_forward.3} parent=1 // pred_check_branch
      %46 = sbr.rel (0) target = $region21
    $region20: #{resnet1d_forward.3} parent=1 // pred_region
      _
    $region21: #{resnet1d_forward.3} parent=1 // pred_fallthru
      _
    // Predicated region
    $region22: #{resnet1d_forward.3} parent=1 // pred_check
      _
    $region23: #{resnet1d_forward.3} parent=1 // pred_check_branch
      %48 = sbr.rel (0) target = $region25
    $region24: #{resnet1d_forward.3} parent=1 // pred_region
      %s50 = ssub.s32 16, 16
      %51 = vsyncadd [#allocation6], %s50
      %s53 = sshll.u32 [#allocation5], 4
      %s54 = int_to_ptr.vmem [resolvable:$true] %s53
      %56 = dma.hbm_to_vmem [thread:$0]  %s5, 16, %s54, [#allocation6]
    $region25: #{resnet1d_forward.3} parent=1 // pred_fallthru
      _
    // Predicated region
    $region26: #{resnet1d_forward.3} parent=1 // pred_check
      _
    $region27: #{resnet1d_forward.3} parent=1 // pred_check_branch
      %58 = sbr.rel (0) target = $region29
    $region28: #{resnet1d_forward.3} parent=1 // pred_region
      _
    $region29: #{resnet1d_forward.3} parent=1 // pred_fallthru
      _
    // Predicated region
    $region30: #{resnet1d_forward.3} parent=1 // pred_check
      _
    $region31: #{resnet1d_forward.3} parent=1 // pred_check_branch
      %60 = sbr.rel (0) target = $region33
    $region32: #{resnet1d_forward.3} parent=1 // pred_region
      %s62 = ssub.s32 16, 16
      %63 = vsyncadd [#allocation6], %s62
      %s65 = sshll.u32 [#allocation7], 4
      %s66 = int_to_ptr.vmem [resolvable:$true] %s65
      %68 = dma.hbm_to_vmem [thread:$0]  %s7, 16, %s66, [#allocation6]
    $region33: #{resnet1d_forward.3} parent=1 // pred_fallthru
      _
    // Predicated region
    $region34: #{resnet1d_forward.3} parent=1 // pred_check
      _
    $region35: #{resnet1d_forward.3} parent=1 // pred_check_branch
      %70 = sbr.rel (0) target = $region37
    $region36: #{resnet1d_forward.3} parent=1 // pred_region
      _
    $region37: #{resnet1d_forward.3} parent=1 // pred_fallthru
      _
    // Predicated region
    $region38: #{resnet1d_forward.3} parent=1 // pred_check
      _
    $region39: #{resnet1d_forward.3} parent=1 // pred_check_branch
      %72 = sbr.rel (0) target = $region41
    $region40: #{resnet1d_forward.3} parent=1 // pred_region
      %s74 = ssub.s32 16, 16
      %75 = vsyncadd [#allocation9], %s74
      %s77 = sshll.u32 [#allocation8], 4
      %s78 = int_to_ptr.vmem [resolvable:$true] %s77
      %80 = dma.hbm_to_vmem [thread:$0]  %s9, 16, %s78, [#allocation9]
    $region41: #{resnet1d_forward.3} parent=1 // pred_fallthru
      _
    // Predicated region
    $region42: #{resnet1d_forward.3} parent=1 // pred_check
      _
    $region43: #{resnet1d_forward.3} parent=1 // pred_check_branch
      %82 = sbr.rel (0) target = $region45
    $region44: #{resnet1d_forward.3} parent=1 // pred_region
      _
    $region45: #{resnet1d_forward.3} parent=1 // pred_fallthru
      _
    // Predicated region
    $region46: #{resnet1d_forward.3} parent=1 // pred_check
      _
    $region47: #{resnet1d_forward.3} parent=1 // pred_check_branch
      %84 = sbr.rel (0) target = $region49
    $region48: #{resnet1d_forward.3} parent=1 // pred_region
      %s86 = ssub.s32 16, 16
      %87 = vsyncadd [#allocation9], %s86
      %s89 = sshll.u32 [#allocation10], 4
      %s90 = int_to_ptr.vmem [resolvable:$true] %s89
      %92 = dma.hbm_to_vmem [thread:$0]  %s11, 16, %s90, [#allocation9]
    $region49: #{resnet1d_forward.3} parent=1 // pred_fallthru
      _
    // Predicated region
    $region50: #{resnet1d_forward.3} parent=1 // pred_check
      _
    $region51: #{resnet1d_forward.3} parent=1 // pred_check_branch
      %94 = sbr.rel (0) target = $region53
    $region52: #{resnet1d_forward.3} parent=1 // pred_region
      _
    $region53: #{resnet1d_forward.3} parent=1 // pred_fallthru
      _
    // Predicated region
    $region54: #{resnet1d_forward.3} parent=1 // pred_check
      _
    $region55: #{resnet1d_forward.3} parent=1 // pred_check_branch
      %96 = sbr.rel (0) target = $region57
    $region56: #{resnet1d_forward.3} parent=1 // pred_region
      %s98 = ssub.s32 16, 16
      %99 = vsyncadd [#allocation12], %s98
      %s101 = sshll.u32 [#allocation11], 4
      %s102 = int_to_ptr.vmem [resolvable:$true] %s101
      %104 = dma.hbm_to_vmem [thread:$0]  %s13, 16, %s102, [#allocation12]
    $region57: #{resnet1d_forward.3} parent=1 // pred_fallthru
      _
    // Predicated region
    $region58: #{resnet1d_forward.3} parent=1 // pred_check
      _
    $region59: #{resnet1d_forward.3} parent=1 // pred_check_branch
      %106 = sbr.rel (0) target = $region61
    $region60: #{resnet1d_forward.3} parent=1 // pred_region
      _
    $region61: #{resnet1d_forward.3} parent=1 // pred_fallthru
      _
    // Predicated region
    $region62: #{resnet1d_forward.3} parent=1 // pred_check
      _
    $region63: #{resnet1d_forward.3} parent=1 // pred_check_branch
      %108 = sbr.rel (0) target = $region65
    $region64: #{resnet1d_forward.3} parent=1 // pred_region
      %s110 = ssub.s32 16, 16
      %111 = vsyncadd [#allocation12], %s110
      %s113 = sshll.u32 [#allocation13], 4
      %s114 = int_to_ptr.vmem [resolvable:$true] %s113
      %116 = dma.hbm_to_vmem [thread:$0]  %s15, 16, %s114, [#allocation12]
    $region65: #{resnet1d_forward.3} parent=1 // pred_fallthru
      _
    // Predicated region
    $region66: #{resnet1d_forward.3} parent=1 // pred_check
      _
    $region67: #{resnet1d_forward.3} parent=1 // pred_check_branch
      %118 = sbr.rel (0) target = $region69
    $region68: #{resnet1d_forward.3} parent=1 // pred_region
      %119 = dma.done [#allocation3], 32
    $region69: #{resnet1d_forward.3} parent=1 // pred_fallthru
      _
    // Predicated region
    $region70: #{resnet1d_forward.3} parent=1 // pred_check
      _
    $region71: #{resnet1d_forward.3} parent=1 // pred_check_branch
      %121 = sbr.rel (0) target = $region73
    $region72: #{resnet1d_forward.3} parent=1 // pred_region
      %122 = dma.done [#allocation6], 16
    $region73: #{resnet1d_forward.3} parent=1 // pred_fallthru
      _
    // Predicated region
    $region74: #{resnet1d_forward.3} parent=1 // pred_check
      _
    $region75: #{resnet1d_forward.3} parent=1 // pred_check_branch
      %124 = sbr.rel (0) target = $region77
    $region76: #{resnet1d_forward.3} parent=1 // pred_region
      %125 = dma.done [#allocation6], 16
    $region77: #{resnet1d_forward.3} parent=1 // pred_fallthru
      _
    // Predicated region
    $region78: #{resnet1d_forward.3} parent=1 // pred_check
      _
    $region79: #{resnet1d_forward.3} parent=1 // pred_check_branch
      %127 = sbr.rel (0) target = $region81
    $region80: #{resnet1d_forward.3} parent=1 // pred_region
      %128 = dma.done [#allocation9], 16
    $region81: #{resnet1d_forward.3} parent=1 // pred_fallthru
      _
    // Predicated region
    $region82: #{resnet1d_forward.3} parent=1 // pred_check
      _
    $region83: #{resnet1d_forward.3} parent=1 // pred_check_branch
      %130 = sbr.rel (0) target = $region85
    $region84: #{resnet1d_forward.3} parent=1 // pred_region
      %131 = dma.done [#allocation9], 16
    $region85: #{resnet1d_forward.3} parent=1 // pred_fallthru
      _
    // Predicated region
    $region86: #{resnet1d_forward.3} parent=1 // pred_check
      _
    $region87: #{resnet1d_forward.3} parent=1 // pred_check_branch
      %133 = sbr.rel (0) target = $region89
    $region88: #{resnet1d_forward.3} parent=1 // pred_region
      %134 = dma.done [#allocation12], 16
    $region89: #{resnet1d_forward.3} parent=1 // pred_fallthru
      _
    // Predicated region
    $region90: #{resnet1d_forward.3} parent=1 // pred_check
      _
    $region91: #{resnet1d_forward.3} parent=1 // pred_check_branch
      %136 = sbr.rel (0) target = $region93
    $region92: #{resnet1d_forward.3} parent=1 // pred_region
      %137 = dma.done [#allocation12], 16
    $region93: #{resnet1d_forward.3} parent=1 // pred_fallthru
      _
    %v138 = vld [vmem:[%s0] sm:$0xff]
    %v139 = vld [vmem:[%s2] sm:$0xff]
    %v140 = vld [vmem:[%s2 + $0x8] sm:$0xff]
    %v141 = vld [vmem:[%s2 + $0x10] sm:$0xff]
    %v142 = vld [vmem:[%s2 + $0x18] sm:$0xff]
    %v143 = vld [vmem:[%s2 + $0x20] sm:$0xff]
    %v144 = vld [vmem:[%s2 + $0x28] sm:$0xff]
    %v145 = vld [vmem:[%s2 + $0x30] sm:$0xff]
    %v146 = vld [vmem:[%s2 + $0x38] sm:$0xff]
    %v147 = vld [vmem:[%s2 + $0x40] sm:$0xff]
    %v148 = vld [vmem:[%s2 + $0x48] sm:$0xff]
    %v149 = vld [vmem:[%s2 + $0x50] sm:$0xff]
    %v150 = vld [vmem:[%s2 + $0x58] sm:$0xff]
    %v151 = vld [vmem:[%s2 + $0x60] sm:$0xff]
    %v152 = vld [vmem:[%s2 + $0x68] sm:$0xff]
    %v153 = vld [vmem:[%s2 + $0x70] sm:$0xff]
    %v154 = vld [vmem:[%s2 + $0x78] sm:$0xff]
    %v155 = vld [vmem:[%s2 + $0x80] sm:$0xff]
    %v156 = vld [vmem:[%s2 + $0x88] sm:$0xff]
    %v157 = vld [vmem:[%s2 + $0x90] sm:$0xff]
    %v158 = vld [vmem:[%s2 + $0x98] sm:$0xff]
    %v159 = vld [vmem:[%s2 + $0xa0] sm:$0xff]
    %v160 = vld [vmem:[%s2 + $0xa8] sm:$0xff]
    %v161 = vld [vmem:[%s2 + $0xb0] sm:$0xff]
    %v162 = vld [vmem:[%s2 + $0xb8] sm:$0xff]
    %v163 = vld [vmem:[%s2 + $0xc0] sm:$0xff]
    %v164 = vld [vmem:[%s2 + $0xc8] sm:$0xff]
    %v165 = vld [vmem:[%s2 + $0xd0] sm:$0xff]
    %v166 = vld [vmem:[%s2 + $0xd8] sm:$0xff]
    %v167 = vld [vmem:[%s2 + $0xe0] sm:$0xff]
    %v168 = vld [vmem:[%s2 + $0xe8] sm:$0xff]
    %v169 = vld [vmem:[%s2 + $0xf0] sm:$0xff]
    %v170 = vld [vmem:[%s2 + $0xf8] sm:$0xff]
    %v171 = vld [vmem:[%s2 + $0x100] sm:$0xff]
    %v172 = vld [vmem:[%s2 + $0x108] sm:$0xff]
    %v173 = vld [vmem:[%s2 + $0x110] sm:$0xff]
    %v174 = vld [vmem:[%s2 + $0x118] sm:$0xff]
    %v175 = vld [vmem:[%s2 + $0x120] sm:$0xff]
    %v176 = vld [vmem:[%s2 + $0x128] sm:$0xff]
    %v177 = vld [vmem:[%s2 + $0x130] sm:$0xff]
    %v178 = vld [vmem:[%s2 + $0x138] sm:$0xff]
    %v179 = vld [vmem:[%s2 + $0x140] sm:$0xff]
    %v180 = vld [vmem:[%s2 + $0x148] sm:$0xff]
    %v181 = vld [vmem:[%s2 + $0x150] sm:$0xff]
    %v182 = vld [vmem:[%s2 + $0x158] sm:$0xff]
    %v183 = vld [vmem:[%s2 + $0x160] sm:$0xff]
    %v184 = vld [vmem:[%s2 + $0x168] sm:$0xff]
    %v185 = vld [vmem:[%s2 + $0x170] sm:$0xff]
    %v186 = vld [vmem:[%s2 + $0x178] sm:$0xff]
    %v187 = vld [vmem:[%s2 + $0x180] sm:$0xff]
    %v188 = vld [vmem:[%s2 + $0x188] sm:$0xff]
    %v189 = vld [vmem:[%s2 + $0x190] sm:$0xff]
    %v190 = vld [vmem:[%s2 + $0x198] sm:$0xff]
    %v191 = vld [vmem:[%s2 + $0x1a0] sm:$0xff]
    %v192 = vld [vmem:[%s2 + $0x1a8] sm:$0xff]
    %v193 = vld [vmem:[%s2 + $0x1b0] sm:$0xff]
    %v194 = vld [vmem:[%s2 + $0x1b8] sm:$0xff]
    %v195 = vld [vmem:[%s2 + $0x1c0] sm:$0xff]
    %v196 = vld [vmem:[%s2 + $0x1c8] sm:$0xff]
    %v197 = vld [vmem:[%s2 + $0x1d0] sm:$0xff]
    %v198 = vld [vmem:[%s2 + $0x1d8] sm:$0xff]
    %v199 = vld [vmem:[%s2 + $0x1e0] sm:$0xff]
    %v200 = vld [vmem:[%s2 + $0x1e8] sm:$0xff]
    %v201 = vld [vmem:[%s2 + $0x1f0] sm:$0xff]
    %v202 = vld [vmem:[%s2 + $0x1f8] sm:$0xff]
    %v203 = vld [vmem:[#allocation2] sm:$0x3]
    %v205 = vlaneseq
    %v206 = vshrl.u32 %v205, 7
    %v207 = vsub.s32 0, %v206
    %v208 = vrot.slane %v203, %v207
    %v209 = vlaneseq
    %v210 = vshrl.u32 %v209, 7
    %v211 = vsub.s32 1, %v210
    %v212 = vrot.slane %v203, %v211
    %v216 = vcombine.high %v138, %v138
    %218 = vmatprep.subr.mxu0 %v140
    %219 = vmatpush1.msra.mxu0 %v139
    %220 = vmatprep.subr.mxu0 %v142
    %221 = vmatpush1.msra.mxu0 %v141
    %222 = vmatprep.subr.mxu0 %v144
    %223 = vmatpush1.msra.mxu0 %v143
    %224 = vmatprep.subr.mxu0 %v146
    %225 = vmatpush1.msra.mxu0 %v145
    %226 = vmatprep.subr.mxu0 %v148
    %227 = vmatpush1.msra.mxu0 %v147
    %228 = vmatprep.subr.mxu0 %v150
    %229 = vmatpush1.msra.mxu0 %v149
    %230 = vmatprep.subr.mxu0 %v152
    %231 = vmatpush1.msra.mxu0 %v151
    %232 = vmatprep.subr.mxu0 %v154
    %233 = vmatpush1.msra.mxu0 %v153
    %234 = vmatprep.subr.mxu0 %v156
    %235 = vmatpush1.msra.mxu0 %v155
    %236 = vmatprep.subr.mxu0 %v158
    %237 = vmatpush1.msra.mxu0 %v157
    %238 = vmatprep.subr.mxu0 %v160
    %239 = vmatpush1.msra.mxu0 %v159
    %240 = vmatprep.subr.mxu0 %v162
    %241 = vmatpush1.msra.mxu0 %v161
    %242 = vmatprep.subr.mxu0 %v164
    %243 = vmatpush1.msra.mxu0 %v163
    %244 = vmatprep.subr.mxu0 %v166
    %245 = vmatpush1.msra.mxu0 %v165
    %246 = vmatprep.subr.mxu0 %v168
    %247 = vmatpush1.msra.mxu0 %v167
    %248 = vmatprep.subr.mxu0 %v170
    %249 = vmatpush1.msra.mxu0 %v169
    %250 = vmatprep.subr.mxu0 %v172
    %251 = vmatpush1.msra.mxu0 %v171
    %252 = vmatprep.subr.mxu0 %v174
    %253 = vmatpush1.msra.mxu0 %v173
    %254 = vmatprep.subr.mxu0 %v176
    %255 = vmatpush1.msra.mxu0 %v175
    %256 = vmatprep.subr.mxu0 %v178
    %257 = vmatpush1.msra.mxu0 %v177
    %258 = vmatprep.subr.mxu0 %v180
    %259 = vmatpush1.msra.mxu0 %v179
    %260 = vmatprep.subr.mxu0 %v182
    %261 = vmatpush1.msra.mxu0 %v181
    %262 = vmatprep.subr.mxu0 %v184
    %263 = vmatpush1.msra.mxu0 %v183
    %264 = vmatprep.subr.mxu0 %v186
    %265 = vmatpush1.msra.mxu0 %v185
    %266 = vmatprep.subr.mxu0 %v188
    %267 = vmatpush1.msra.mxu0 %v187
    %268 = vmatprep.subr.mxu0 %v190
    %269 = vmatpush1.msra.mxu0 %v189
    %270 = vmatprep.subr.mxu0 %v192
    %271 = vmatpush1.msra.mxu0 %v191
    %272 = vmatprep.subr.mxu0 %v194
    %273 = vmatpush1.msra.mxu0 %v193
    %274 = vmatprep.subr.mxu0 %v196
    %275 = vmatpush1.msra.mxu0 %v195
    %276 = vmatprep.subr.mxu0 %v198
    %277 = vmatpush1.msra.mxu0 %v197
    %278 = vmatprep.subr.mxu0 %v200
    %279 = vmatpush1.msra.mxu0 %v199
    %280 = vmatprep.subr.mxu0 %v202
    %281 = vmatpush1.msra.mxu0 %v201
    %282 = vmatprep.mubr.f32.mxu0 %v216
    %283 = vmatmul.mubr.f32.gmra.mrb[0].mxu0 %v138
    %v284 = vpop.f32.mrb[0].mxu0
    %v285 = vadd.f32 %v208, %v284
    %v286 = vpop.f32.mrb[0].mxu0
    %v287 = vadd.f32 %v212, %v286
    %288 = vdwg.mxu0
    %v289 = vmax.f32 %v285, 0.0
    %v290 = vmax.f32 %v287, 0.0
    %v291 = vld [vmem:[%s4] sm:$0xff]
    %v292 = vld [vmem:[%s4 + $0x8] sm:$0xff]
    %v293 = vld [vmem:[%s4 + $0x10] sm:$0xff]
    %v294 = vld [vmem:[%s4 + $0x18] sm:$0xff]
    %v295 = vld [vmem:[%s4 + $0x20] sm:$0xff]
    %v296 = vld [vmem:[%s4 + $0x28] sm:$0xff]
    %v297 = vld [vmem:[%s4 + $0x30] sm:$0xff]
    %v298 = vld [vmem:[%s4 + $0x38] sm:$0xff]
    %v299 = vld [vmem:[%s4 + $0x40] sm:$0xff]
    %v300 = vld [vmem:[%s4 + $0x48] sm:$0xff]
    %v301 = vld [vmem:[%s4 + $0x50] sm:$0xff]
    %v302 = vld [vmem:[%s4 + $0x58] sm:$0xff]
    %v303 = vld [vmem:[%s4 + $0x60] sm:$0xff]
    %v304 = vld [vmem:[%s4 + $0x68] sm:$0xff]
    %v305 = vld [vmem:[%s4 + $0x70] sm:$0xff]
    %v306 = vld [vmem:[%s4 + $0x78] sm:$0xff]
    %v307 = vld [vmem:[%s4 + $0x80] sm:$0xff]
    %v308 = vld [vmem:[%s4 + $0x88] sm:$0xff]
    %v309 = vld [vmem:[%s4 + $0x90] sm:$0xff]
    %v310 = vld [vmem:[%s4 + $0x98] sm:$0xff]
    %v311 = vld [vmem:[%s4 + $0xa0] sm:$0xff]
    %v312 = vld [vmem:[%s4 + $0xa8] sm:$0xff]
    %v313 = vld [vmem:[%s4 + $0xb0] sm:$0xff]
    %v314 = vld [vmem:[%s4 + $0xb8] sm:$0xff]
    %v315 = vld [vmem:[%s4 + $0xc0] sm:$0xff]
    %v316 = vld [vmem:[%s4 + $0xc8] sm:$0xff]
    %v317 = vld [vmem:[%s4 + $0xd0] sm:$0xff]
    %v318 = vld [vmem:[%s4 + $0xd8] sm:$0xff]
    %v319 = vld [vmem:[%s4 + $0xe0] sm:$0xff]
    %v320 = vld [vmem:[%s4 + $0xe8] sm:$0xff]
    %v321 = vld [vmem:[%s4 + $0xf0] sm:$0xff]
    %v322 = vld [vmem:[%s4 + $0xf8] sm:$0xff]
    %v323 = vld [vmem:[#allocation5] sm:$0x1]
    %v325 = vlaneseq
    %v326 = vshrl.u32 %v325, 7
    %v327 = vsub.s32 0, %v326
    %v328 = vrot.slane %v323, %v327
    %330 = vmatprep.subr.mxu0 0.0
    %331 = vmatpush1.msra.mxu0 %v291
    %332 = vmatprep.subr.mxu0 0.0
    %333 = vmatpush1.msra.mxu0 %v292
    %334 = vmatprep.subr.mxu0 0.0
    %335 = vmatpush1.msra.mxu0 %v293
    %336 = vmatprep.subr.mxu0 0.0
    %337 = vmatpush1.msra.mxu0 %v294
    %338 = vmatprep.subr.mxu0 0.0
    %339 = vmatpush1.msra.mxu0 %v295
    %340 = vmatprep.subr.mxu0 0.0
    %341 = vmatpush1.msra.mxu0 %v296
    %342 = vmatprep.subr.mxu0 0.0
    %343 = vmatpush1.msra.mxu0 %v297
    %344 = vmatprep.subr.mxu0 0.0
    %345 = vmatpush1.msra.mxu0 %v298
    %346 = vmatprep.subr.mxu0 0.0
    %347 = vmatpush1.msra.mxu0 %v299
    %348 = vmatprep.subr.mxu0 0.0
    %349 = vmatpush1.msra.mxu0 %v300
    %350 = vmatprep.subr.mxu0 0.0
    %351 = vmatpush1.msra.mxu0 %v301
    %352 = vmatprep.subr.mxu0 0.0
    %353 = vmatpush1.msra.mxu0 %v302
    %354 = vmatprep.subr.mxu0 0.0
    %355 = vmatpush1.msra.mxu0 %v303
    %356 = vmatprep.subr.mxu0 0.0
    %357 = vmatpush1.msra.mxu0 %v304
    %358 = vmatprep.subr.mxu0 0.0
    %359 = vmatpush1.msra.mxu0 %v305
    %360 = vmatprep.subr.mxu0 0.0
    %361 = vmatpush1.msra.mxu0 %v306
    %362 = vmatprep.subr.mxu0 0.0
    %363 = vmatpush1.msra.mxu0 %v307
    %364 = vmatprep.subr.mxu0 0.0
    %365 = vmatpush1.msra.mxu0 %v308
    %366 = vmatprep.subr.mxu0 0.0
    %367 = vmatpush1.msra.mxu0 %v309
    %368 = vmatprep.subr.mxu0 0.0
    %369 = vmatpush1.msra.mxu0 %v310
    %370 = vmatprep.subr.mxu0 0.0
    %371 = vmatpush1.msra.mxu0 %v311
    %372 = vmatprep.subr.mxu0 0.0
    %373 = vmatpush1.msra.mxu0 %v312
    %374 = vmatprep.subr.mxu0 0.0
    %375 = vmatpush1.msra.mxu0 %v313
    %376 = vmatprep.subr.mxu0 0.0
    %377 = vmatpush1.msra.mxu0 %v314
    %378 = vmatprep.subr.mxu0 0.0
    %379 = vmatpush1.msra.mxu0 %v315
    %380 = vmatprep.subr.mxu0 0.0
    %381 = vmatpush1.msra.mxu0 %v316
    %382 = vmatprep.subr.mxu0 0.0
    %383 = vmatpush1.msra.mxu0 %v317
    %384 = vmatprep.subr.mxu0 0.0
    %385 = vmatpush1.msra.mxu0 %v318
    %386 = vmatprep.subr.mxu0 0.0
    %387 = vmatpush1.msra.mxu0 %v319
    %388 = vmatprep.subr.mxu0 0.0
    %389 = vmatpush1.msra.mxu0 %v320
    %390 = vmatprep.subr.mxu0 0.0
    %391 = vmatpush1.msra.mxu0 %v321
    %392 = vmatprep.subr.mxu0 0.0
    %393 = vmatpush1.msra.mxu0 %v322
    %394 = vmatprep.mubr.f32.mxu0 %v290
    %395 = vmatmul.mubr.f32.gmra.mrb[0].mxu0 %v289
    %v396 = vpop.f32.mrb[0].mxu0
    %v397 = vadd.f32 %v328, %v396
    %v398 = vpop.f32.mrb[0].mxu0
    %399 = vdwg.mxu0
    %v400 = vmax.f32 %v397, 0.0
    %v401 = vld [vmem:[%s6] sm:$0xff]
    %v402 = vld [vmem:[%s6 + $0x8] sm:$0xff]
    %v403 = vld [vmem:[%s6 + $0x10] sm:$0xff]
    %v404 = vld [vmem:[%s6 + $0x18] sm:$0xff]
    %v405 = vld [vmem:[%s6 + $0x20] sm:$0xff]
    %v406 = vld [vmem:[%s6 + $0x28] sm:$0xff]
    %v407 = vld [vmem:[%s6 + $0x30] sm:$0xff]
    %v408 = vld [vmem:[%s6 + $0x38] sm:$0xff]
    %v409 = vld [vmem:[%s6 + $0x40] sm:$0xff]
    %v410 = vld [vmem:[%s6 + $0x48] sm:$0xff]
    %v411 = vld [vmem:[%s6 + $0x50] sm:$0xff]
    %v412 = vld [vmem:[%s6 + $0x58] sm:$0xff]
    %v413 = vld [vmem:[%s6 + $0x60] sm:$0xff]
    %v414 = vld [vmem:[%s6 + $0x68] sm:$0xff]
    %v415 = vld [vmem:[%s6 + $0x70] sm:$0xff]
    %v416 = vld [vmem:[%s6 + $0x78] sm:$0xff]
    %v417 = vld [vmem:[#allocation7] sm:$0x1]
    %v419 = vlaneseq
    %v420 = vshrl.u32 %v419, 7
    %v421 = vsub.s32 0, %v420
    %v422 = vrot.slane %v417, %v421
    %424 = vmatprep.subr.mxu0 0.0
    %425 = vmatpush1.msra.mxu0 %v401
    %426 = vmatprep.subr.mxu0 0.0
    %427 = vmatpush1.msra.mxu0 %v402
    %428 = vmatprep.subr.mxu0 0.0
    %429 = vmatpush1.msra.mxu0 %v403
    %430 = vmatprep.subr.mxu0 0.0
    %431 = vmatpush1.msra.mxu0 %v404
    %432 = vmatprep.subr.mxu0 0.0
    %433 = vmatpush1.msra.mxu0 %v405
    %434 = vmatprep.subr.mxu0 0.0
    %435 = vmatpush1.msra.mxu0 %v406
    %436 = vmatprep.subr.mxu0 0.0
    %437 = vmatpush1.msra.mxu0 %v407
    %438 = vmatprep.subr.mxu0 0.0
    %439 = vmatpush1.msra.mxu0 %v408
    %440 = vmatprep.subr.mxu0 0.0
    %441 = vmatpush1.msra.mxu0 %v409
    %442 = vmatprep.subr.mxu0 0.0
    %443 = vmatpush1.msra.mxu0 %v410
    %444 = vmatprep.subr.mxu0 0.0
    %445 = vmatpush1.msra.mxu0 %v411
    %446 = vmatprep.subr.mxu0 0.0
    %447 = vmatpush1.msra.mxu0 %v412
    %448 = vmatprep.subr.mxu0 0.0
    %449 = vmatpush1.msra.mxu0 %v413
    %450 = vmatprep.subr.mxu0 0.0
    %451 = vmatpush1.msra.mxu0 %v414
    %452 = vmatprep.subr.mxu0 0.0
    %453 = vmatpush1.msra.mxu0 %v415
    %454 = vmatprep.subr.mxu0 0.0
    %455 = vmatpush1.msra.mxu0 %v416
    %456 = vmatprep.subr.mxu0 0.0
    %457 = vmatpush1.msra.mxu0 0.0
    %458 = vmatprep.subr.mxu0 0.0
    %459 = vmatpush1.msra.mxu0 0.0
    %460 = vmatprep.subr.mxu0 0.0
    %461 = vmatpush1.msra.mxu0 0.0
    %462 = vmatprep.subr.mxu0 0.0
    %463 = vmatpush1.msra.mxu0 0.0
    %464 = vmatprep.subr.mxu0 0.0
    %465 = vmatpush1.msra.mxu0 0.0
    %466 = vmatprep.subr.mxu0 0.0
    %467 = vmatpush1.msra.mxu0 0.0
    %468 = vmatprep.subr.mxu0 0.0
    %469 = vmatpush1.msra.mxu0 0.0
    %470 = vmatprep.subr.mxu0 0.0
    %471 = vmatpush1.msra.mxu0 0.0
    %472 = vmatprep.subr.mxu0 0.0
    %473 = vmatpush1.msra.mxu0 0.0
    %474 = vmatprep.subr.mxu0 0.0
    %475 = vmatpush1.msra.mxu0 0.0
    %476 = vmatprep.subr.mxu0 0.0
    %477 = vmatpush1.msra.mxu0 0.0
    %478 = vmatprep.subr.mxu0 0.0
    %479 = vmatpush1.msra.mxu0 0.0
    %480 = vmatprep.subr.mxu0 0.0
    %481 = vmatpush1.msra.mxu0 0.0
    %482 = vmatprep.subr.mxu0 0.0
    %483 = vmatpush1.msra.mxu0 0.0
    %484 = vmatprep.subr.mxu0 0.0
    %485 = vmatpush1.msra.mxu0 0.0
    %486 = vmatprep.subr.mxu0 0.0
    %487 = vmatpush1.msra.mxu0 0.0
    %488 = vmatprep.mubr.f32.mxu0 0.0
    %489 = vmatmul.mubr.f32.gmra.mrb[0].mxu0 %v400
    %v490 = vpop.f32.mrb[0].mxu0
    %v491 = vadd.f32 %v422, %v490
    %v492 = vpop.f32.mrb[0].mxu0
    %493 = vdwg.mxu0
    %v494 = vmax.f32 %v491, 0.0
    %v495 = vld [vmem:[%s1] sm:$0x3]
    %v496 = vld [vmem:[%s8] sm:$0xff]
    %v497 = vld [vmem:[#allocation8] sm:$0x1]
    %v499 = vlaneseq
    %v500 = vshrl.u32 %v499, 7
    %v501 = vsub.s32 0, %v500
    %v502 = vrot.slane %v497, %v501
    %vm504 = vcmask 64512
    %v506 = vsel %vm504, %v495, 0
    %508 = vmatprep.subr.mxu0 0.0
    %509 = vmatpush1.msra.mxu0 %v496
    %510 = vmatprep.subr.mxu0 0.0
    %511 = vmatpush1.msra.mxu0 0.0
    %512 = vmatprep.subr.mxu0 0.0
    %513 = vmatpush1.msra.mxu0 0.0
    %514 = vmatprep.subr.mxu0 0.0
    %515 = vmatpush1.msra.mxu0 0.0
    %516 = vmatprep.subr.mxu0 0.0
    %517 = vmatpush1.msra.mxu0 0.0
    %518 = vmatprep.subr.mxu0 0.0
    %519 = vmatpush1.msra.mxu0 0.0
    %520 = vmatprep.subr.mxu0 0.0
    %521 = vmatpush1.msra.mxu0 0.0
    %522 = vmatprep.subr.mxu0 0.0
    %523 = vmatpush1.msra.mxu0 0.0
    %524 = vmatprep.subr.mxu0 0.0
    %525 = vmatpush1.msra.mxu0 0.0
    %526 = vmatprep.subr.mxu0 0.0
    %527 = vmatpush1.msra.mxu0 0.0
    %528 = vmatprep.subr.mxu0 0.0
    %529 = vmatpush1.msra.mxu0 0.0
    %530 = vmatprep.subr.mxu0 0.0
    %531 = vmatpush1.msra.mxu0 0.0
    %532 = vmatprep.subr.mxu0 0.0
    %533 = vmatpush1.msra.mxu0 0.0
    %534 = vmatprep.subr.mxu0 0.0
    %535 = vmatpush1.msra.mxu0 0.0
    %536 = vmatprep.subr.mxu0 0.0
    %537 = vmatpush1.msra.mxu0 0.0
    %538 = vmatprep.subr.mxu0 0.0
    %539 = vmatpush1.msra.mxu0 0.0
    %540 = vmatprep.subr.mxu0 0.0
    %541 = vmatpush1.msra.mxu0 0.0
    %542 = vmatprep.subr.mxu0 0.0
    %543 = vmatpush1.msra.mxu0 0.0
    %544 = vmatprep.subr.mxu0 0.0
    %545 = vmatpush1.msra.mxu0 0.0
    %546 = vmatprep.subr.mxu0 0.0
    %547 = vmatpush1.msra.mxu0 0.0
    %548 = vmatprep.subr.mxu0 0.0
    %549 = vmatpush1.msra.mxu0 0.0
    %550 = vmatprep.subr.mxu0 0.0
    %551 = vmatpush1.msra.mxu0 0.0
    %552 = vmatprep.subr.mxu0 0.0
    %553 = vmatpush1.msra.mxu0 0.0
    %554 = vmatprep.subr.mxu0 0.0
    %555 = vmatpush1.msra.mxu0 0.0
    %556 = vmatprep.subr.mxu0 0.0
    %557 = vmatpush1.msra.mxu0 0.0
    %558 = vmatprep.subr.mxu0 0.0
    %559 = vmatpush1.msra.mxu0 0.0
    %560 = vmatprep.subr.mxu0 0.0
    %561 = vmatpush1.msra.mxu0 0.0
    %562 = vmatprep.subr.mxu0 0.0
    %563 = vmatpush1.msra.mxu0 0.0
    %564 = vmatprep.subr.mxu0 0.0
    %565 = vmatpush1.msra.mxu0 0.0
    %566 = vmatprep.subr.mxu0 0.0
    %567 = vmatpush1.msra.mxu0 0.0
    %568 = vmatprep.subr.mxu0 0.0
    %569 = vmatpush1.msra.mxu0 0.0
    %570 = vmatprep.subr.mxu0 0.0
    %571 = vmatpush1.msra.mxu0 0.0
    %572 = vmatprep.mubr.f32.mxu0 0.0
    %573 = vmatmul.mubr.f32.gmra.mrb[0].mxu0 %v506
    %v574 = vpop.f32.mrb[0].mxu0
    %v575 = vadd.f32 %v502, %v574
    %v576 = vpop.f32.mrb[0].mxu0
    %577 = vdwg.mxu0
    %v578 = vtanh.pop %v575
    %v580 = vrot.slane %v494, 2
    %581 = vrot.lane.b32.xlu0 %v580, 8
    %v582 = vpop.permute.xlu0 %581
    %585 = vrot.lane.b32.xlu0 %v578, 16
    %v586 = vpop.permute.xlu0 %585
    %v588 = vsel %vm504, %v494, %v582
    %vm589 = vcmask 130048
    %v590 = vsel %vm589, %v588, %v586
    %v591 = vld [vmem:[%s10] sm:$0xff]
    %v592 = vld [vmem:[%s10 + $0x8] sm:$0xff]
    %v593 = vld [vmem:[%s10 + $0x10] sm:$0xff]
    %v594 = vld [vmem:[#allocation10] sm:$0x1]
    %v596 = vlaneseq
    %v597 = vshrl.u32 %v596, 7
    %v598 = vsub.s32 0, %v597
    %v599 = vrot.slane %v594, %v598
    %vm601 = vcmask 195584
    %v603 = vsel %vm601, %v590, 0
    %605 = vmatprep.subr.mxu0 0.0
    %606 = vmatpush1.msra.mxu0 %v591
    %607 = vmatprep.subr.mxu0 0.0
    %608 = vmatpush1.msra.mxu0 %v592
    %609 = vmatprep.subr.mxu0 0.0
    %610 = vmatpush1.msra.mxu0 %v593
    %611 = vmatprep.subr.mxu0 0.0
    %612 = vmatpush1.msra.mxu0 0.0
    %613 = vmatprep.subr.mxu0 0.0
    %614 = vmatpush1.msra.mxu0 0.0
    %615 = vmatprep.subr.mxu0 0.0
    %616 = vmatpush1.msra.mxu0 0.0
    %617 = vmatprep.subr.mxu0 0.0
    %618 = vmatpush1.msra.mxu0 0.0
    %619 = vmatprep.subr.mxu0 0.0
    %620 = vmatpush1.msra.mxu0 0.0
    %621 = vmatprep.subr.mxu0 0.0
    %622 = vmatpush1.msra.mxu0 0.0
    %623 = vmatprep.subr.mxu0 0.0
    %624 = vmatpush1.msra.mxu0 0.0
    %625 = vmatprep.subr.mxu0 0.0
    %626 = vmatpush1.msra.mxu0 0.0
    %627 = vmatprep.subr.mxu0 0.0
    %628 = vmatpush1.msra.mxu0 0.0
    %629 = vmatprep.subr.mxu0 0.0
    %630 = vmatpush1.msra.mxu0 0.0
    %631 = vmatprep.subr.mxu0 0.0
    %632 = vmatpush1.msra.mxu0 0.0
    %633 = vmatprep.subr.mxu0 0.0
    %634 = vmatpush1.msra.mxu0 0.0
    %635 = vmatprep.subr.mxu0 0.0
    %636 = vmatpush1.msra.mxu0 0.0
    %637 = vmatprep.subr.mxu0 0.0
    %638 = vmatpush1.msra.mxu0 0.0
    %639 = vmatprep.subr.mxu0 0.0
    %640 = vmatpush1.msra.mxu0 0.0
    %641 = vmatprep.subr.mxu0 0.0
    %642 = vmatpush1.msra.mxu0 0.0
    %643 = vmatprep.subr.mxu0 0.0
    %644 = vmatpush1.msra.mxu0 0.0
    %645 = vmatprep.subr.mxu0 0.0
    %646 = vmatpush1.msra.mxu0 0.0
    %647 = vmatprep.subr.mxu0 0.0
    %648 = vmatpush1.msra.mxu0 0.0
    %649 = vmatprep.subr.mxu0 0.0
    %650 = vmatpush1.msra.mxu0 0.0
    %651 = vmatprep.subr.mxu0 0.0
    %652 = vmatpush1.msra.mxu0 0.0
    %653 = vmatprep.subr.mxu0 0.0
    %654 = vmatpush1.msra.mxu0 0.0
    %655 = vmatprep.subr.mxu0 0.0
    %656 = vmatpush1.msra.mxu0 0.0
    %657 = vmatprep.subr.mxu0 0.0
    %658 = vmatpush1.msra.mxu0 0.0
    %659 = vmatprep.subr.mxu0 0.0
    %660 = vmatpush1.msra.mxu0 0.0
    %661 = vmatprep.subr.mxu0 0.0
    %662 = vmatpush1.msra.mxu0 0.0
    %663 = vmatprep.subr.mxu0 0.0
    %664 = vmatpush1.msra.mxu0 0.0
    %665 = vmatprep.subr.mxu0 0.0
    %666 = vmatpush1.msra.mxu0 0.0
    %667 = vmatprep.subr.mxu0 0.0
    %668 = vmatpush1.msra.mxu0 0.0
    %669 = vmatprep.mubr.f32.mxu0 0.0
    %670 = vmatmul.mubr.f32.gmra.mrb[0].mxu0 %v603
    %v671 = vpop.f32.mrb[0].mxu0
    %v672 = vadd.f32 %v599, %v671
    %v673 = vpop.f32.mrb[0].mxu0
    %674 = vdwg.mxu0
    %v675 = vmax.f32 %v672, 0.0
    %v676 = vld [vmem:[%s12] sm:$0xff]
    %v677 = vld [vmem:[%s12 + $0x8] sm:$0xff]
    %v678 = vld [vmem:[#allocation11] sm:$0x1]
    %v680 = vlaneseq
    %v681 = vshrl.u32 %v680, 7
    %v682 = vsub.s32 0, %v681
    %v683 = vrot.slane %v678, %v682
    %v686 = vsel %vm589, %v675, 0
    %688 = vmatprep.subr.mxu0 0.0
    %689 = vmatpush1.msra.mxu0 %v676
    %690 = vmatprep.subr.mxu0 0.0
    %691 = vmatpush1.msra.mxu0 %v677
    %692 = vmatprep.subr.mxu0 0.0
    %693 = vmatpush1.msra.mxu0 0.0
    %694 = vmatprep.subr.mxu0 0.0
    %695 = vmatpush1.msra.mxu0 0.0
    %696 = vmatprep.subr.mxu0 0.0
    %697 = vmatpush1.msra.mxu0 0.0
    %698 = vmatprep.subr.mxu0 0.0
    %699 = vmatpush1.msra.mxu0 0.0
    %700 = vmatprep.subr.mxu0 0.0
    %701 = vmatpush1.msra.mxu0 0.0
    %702 = vmatprep.subr.mxu0 0.0
    %703 = vmatpush1.msra.mxu0 0.0
    %704 = vmatprep.subr.mxu0 0.0
    %705 = vmatpush1.msra.mxu0 0.0
    %706 = vmatprep.subr.mxu0 0.0
    %707 = vmatpush1.msra.mxu0 0.0
    %708 = vmatprep.subr.mxu0 0.0
    %709 = vmatpush1.msra.mxu0 0.0
    %710 = vmatprep.subr.mxu0 0.0
    %711 = vmatpush1.msra.mxu0 0.0
    %712 = vmatprep.subr.mxu0 0.0
    %713 = vmatpush1.msra.mxu0 0.0
    %714 = vmatprep.subr.mxu0 0.0
    %715 = vmatpush1.msra.mxu0 0.0
    %716 = vmatprep.subr.mxu0 0.0
    %717 = vmatpush1.msra.mxu0 0.0
    %718 = vmatprep.subr.mxu0 0.0
    %719 = vmatpush1.msra.mxu0 0.0
    %720 = vmatprep.subr.mxu0 0.0
    %721 = vmatpush1.msra.mxu0 0.0
    %722 = vmatprep.subr.mxu0 0.0
    %723 = vmatpush1.msra.mxu0 0.0
    %724 = vmatprep.subr.mxu0 0.0
    %725 = vmatpush1.msra.mxu0 0.0
    %726 = vmatprep.subr.mxu0 0.0
    %727 = vmatpush1.msra.mxu0 0.0
    %728 = vmatprep.subr.mxu0 0.0
    %729 = vmatpush1.msra.mxu0 0.0
    %730 = vmatprep.subr.mxu0 0.0
    %731 = vmatpush1.msra.mxu0 0.0
    %732 = vmatprep.subr.mxu0 0.0
    %733 = vmatpush1.msra.mxu0 0.0
    %734 = vmatprep.subr.mxu0 0.0
    %735 = vmatpush1.msra.mxu0 0.0
    %736 = vmatprep.subr.mxu0 0.0
    %737 = vmatpush1.msra.mxu0 0.0
    %738 = vmatprep.subr.mxu0 0.0
    %739 = vmatpush1.msra.mxu0 0.0
    %740 = vmatprep.subr.mxu0 0.0
    %741 = vmatpush1.msra.mxu0 0.0
    %742 = vmatprep.subr.mxu0 0.0
    %743 = vmatpush1.msra.mxu0 0.0
    %744 = vmatprep.subr.mxu0 0.0
    %745 = vmatpush1.msra.mxu0 0.0
    %746 = vmatprep.subr.mxu0 0.0
    %747 = vmatpush1.msra.mxu0 0.0
    %748 = vmatprep.subr.mxu0 0.0
    %749 = vmatpush1.msra.mxu0 0.0
    %750 = vmatprep.subr.mxu0 0.0
    %751 = vmatpush1.msra.mxu0 0.0
    %752 = vmatprep.mubr.f32.mxu0 0.0
    %753 = vmatmul.mubr.f32.gmra.mrb[0].mxu0 %v686
    %v754 = vpop.f32.mrb[0].mxu0
    %v755 = vadd.f32 %v683, %v754
    %v756 = vpop.f32.mrb[0].mxu0
    %757 = vdwg.mxu0
    %v758 = vmax.f32 %v755, 0.0
    %v759 = vld [vmem:[%s14] sm:$0xff]
    %v760 = vld [vmem:[#allocation13] sm:$0x1]
    %v762 = vlaneseq
    %v763 = vshrl.u32 %v762, 7
    %v764 = vsub.s32 0, %v763
    %v765 = vrot.slane %v760, %v764
    %v768 = vsel %vm504, %v758, 0
    %770 = vmatprep.subr.mxu0 0.0
    %771 = vmatpush1.msra.mxu0 %v759
    %772 = vmatprep.subr.mxu0 0.0
    %773 = vmatpush1.msra.mxu0 0.0
    %774 = vmatprep.subr.mxu0 0.0
    %775 = vmatpush1.msra.mxu0 0.0
    %776 = vmatprep.subr.mxu0 0.0
    %777 = vmatpush1.msra.mxu0 0.0
    %778 = vmatprep.subr.mxu0 0.0
    %779 = vmatpush1.msra.mxu0 0.0
    %780 = vmatprep.subr.mxu0 0.0
    %781 = vmatpush1.msra.mxu0 0.0
    %782 = vmatprep.subr.mxu0 0.0
    %783 = vmatpush1.msra.mxu0 0.0
    %784 = vmatprep.subr.mxu0 0.0
    %785 = vmatpush1.msra.mxu0 0.0
    %786 = vmatprep.subr.mxu0 0.0
    %787 = vmatpush1.msra.mxu0 0.0
    %788 = vmatprep.subr.mxu0 0.0
    %789 = vmatpush1.msra.mxu0 0.0
    %790 = vmatprep.subr.mxu0 0.0
    %791 = vmatpush1.msra.mxu0 0.0
    %792 = vmatprep.subr.mxu0 0.0
    %793 = vmatpush1.msra.mxu0 0.0
    %794 = vmatprep.subr.mxu0 0.0
    %795 = vmatpush1.msra.mxu0 0.0
    %796 = vmatprep.subr.mxu0 0.0
    %797 = vmatpush1.msra.mxu0 0.0
    %798 = vmatprep.subr.mxu0 0.0
    %799 = vmatpush1.msra.mxu0 0.0
    %800 = vmatprep.subr.mxu0 0.0
    %801 = vmatpush1.msra.mxu0 0.0
    %802 = vmatprep.subr.mxu0 0.0
    %803 = vmatpush1.msra.mxu0 0.0
    %804 = vmatprep.subr.mxu0 0.0
    %805 = vmatpush1.msra.mxu0 0.0
    %806 = vmatprep.subr.mxu0 0.0
    %807 = vmatpush1.msra.mxu0 0.0
    %808 = vmatprep.subr.mxu0 0.0
    %809 = vmatpush1.msra.mxu0 0.0
    %810 = vmatprep.subr.mxu0 0.0
    %811 = vmatpush1.msra.mxu0 0.0
    %812 = vmatprep.subr.mxu0 0.0
    %813 = vmatpush1.msra.mxu0 0.0
    %814 = vmatprep.subr.mxu0 0.0
    %815 = vmatpush1.msra.mxu0 0.0
    %816 = vmatprep.subr.mxu0 0.0
    %817 = vmatpush1.msra.mxu0 0.0
    %818 = vmatprep.subr.mxu0 0.0
    %819 = vmatpush1.msra.mxu0 0.0
    %820 = vmatprep.subr.mxu0 0.0
    %821 = vmatpush1.msra.mxu0 0.0
    %822 = vmatprep.subr.mxu0 0.0
    %823 = vmatpush1.msra.mxu0 0.0
    %824 = vmatprep.subr.mxu0 0.0
    %825 = vmatpush1.msra.mxu0 0.0
    %826 = vmatprep.subr.mxu0 0.0
    %827 = vmatpush1.msra.mxu0 0.0
    %828 = vmatprep.subr.mxu0 0.0
    %829 = vmatpush1.msra.mxu0 0.0
    %830 = vmatprep.subr.mxu0 0.0
    %831 = vmatpush1.msra.mxu0 0.0
    %832 = vmatprep.subr.mxu0 0.0
    %833 = vmatpush1.msra.mxu0 0.0
    %834 = vmatprep.mubr.f32.mxu0 0.0
    %835 = vmatmul.mubr.f32.gmra.mrb[0].mxu0 %v768
    %v836 = vpop.f32.mrb[0].mxu0
    %v837 = vadd.f32 %v765, %v836
    %v838 = vpop.f32.mrb[0].mxu0
    %839 = vdwg.mxu0
    %v840 = vmax.f32 %v837, 0.0
    %vm841 = vcmask 9216
    %842 = vst.msk [vmem:[#allocation14] sm:$0x3] %vm841, %v840
    %vm843 = vcmask 60418
    %844 = vst.msk [vmem:[#allocation15 - $0x2] sm:$0xc] %vm843, %v494
    // Predicated region
    $region94: #{resnet1d_forward.3} parent=1 // pred_check
      _
    $region95: #{resnet1d_forward.3} parent=1 // pred_check_branch
      %846 = sbr.rel (0) target = $region97
    $region96: #{resnet1d_forward.3} parent=1 // pred_region
      %s848 = ssub.s32 32, 32
      %849 = vsyncadd [#allocation4], %s848
      %s851 = sshll.u32 [#allocation14], 4
      %s852 = int_to_ptr.vmem [resolvable:$true] %s851
      %854 = dma.vmem_to_hbm [thread:$0]  %s852, 32, %s16, [#allocation4]
    $region97: #{resnet1d_forward.3} parent=1 // pred_fallthru
      _
    // Predicated region
    $region98: #{resnet1d_forward.3} parent=1 // pred_check
      _
    $region99: #{resnet1d_forward.3} parent=1 // pred_check_branch
      %856 = sbr.rel (0) target = $region101
    $region100: #{resnet1d_forward.3} parent=1 // pred_region
      %s858 = ssub.s32 32, 32
      %859 = vsyncadd [#allocation16], %s858
      %s861 = sshll.u32 [#allocation15], 4
      %s862 = int_to_ptr.vmem [resolvable:$true] %s861
      %864 = dma.vmem_to_hbm [thread:$0]  %s862, 32, %s17, [#allocation16]
    $region101: #{resnet1d_forward.3} parent=1 // pred_fallthru
      _
    // Predicated region
    $region102: #{resnet1d_forward.3} parent=1 // pred_check
      _
    $region103: #{resnet1d_forward.3} parent=1 // pred_check_branch
      %866 = sbr.rel (0) target = $region105
    $region104: #{resnet1d_forward.3} parent=1 // pred_region
      %867 = dma.done [#allocation4], 32
    $region105: #{resnet1d_forward.3} parent=1 // pred_fallthru
      _
    // Predicated region
    $region106: #{resnet1d_forward.3} parent=1 // pred_check
      _
    $region107: #{resnet1d_forward.3} parent=1 // pred_check_branch
      %869 = sbr.rel (0) target = $region109
    $region108: #{resnet1d_forward.3} parent=1 // pred_region
      %870 = dma.done [#allocation16], 32
    $region109: #{resnet1d_forward.3} parent=1 // pred_fallthru
      _
    %871 = vsyncpa [#allocation3], 1
    %872 = vsyncpa [#allocation6], 1
    %873 = vsyncpa [#allocation9], 1
    %874 = vsyncpa [#allocation12], 1
    %875 = vsyncpa [#allocation4], 1
    %876 = vsyncpa [#allocation16], 1

// kernel: resnet1d_forward.2
$region0: #{resnet1d_forward.2}
  #allocation0 [shape = 'u32[]', space=smem, size = 0x4, offset = 0x4, fixed_abs, tag = 'smem constant byte address 0x4 - core index']
  #allocation1 [shape = 'u32[144,128]{1,0:T(1,128)}', space=vmem, size = 0x12000, scoped, tag = 'internal scratch']
  %s0 = inlined_call_operand.vmem [shape: f32[4,256], index: 0, kind: input, shape index: {}]
  %s1 = inlined_call_operand.vmem [shape: f32[1,256], index: 1, kind: input, shape index: {}]
  %s2 = inlined_call_operand.vmem [shape: f32[1,256], index: 2, kind: input, shape index: {}]
  %s3 = inlined_call_operand.vmem [shape: f32[64,8], index: 3, kind: input, shape index: {}]
  %s4 = inlined_call_operand.vmem [shape: f32[8,12], index: 4, kind: input, shape index: {}]
  %s5 = inlined_call_operand.vmem [shape: f32[8,24], index: 5, kind: input, shape index: {}]
  %s6 = inlined_call_operand.vmem [shape: f32[8,24], index: 6, kind: input, shape index: {}]
  %s7 = inlined_call_operand.vmem [shape: f32[16,24], index: 7, kind: input, shape index: {}]
  %s8 = inlined_call_operand.vmem [shape: f32[16,24], index: 8, kind: input, shape index: {}]
  %s9 = inlined_call_operand.vmem [shape: f32[16,48], index: 9, kind: input, shape index: {}]
  %s10 = inlined_call_operand.vmem [shape: f32[32,48], index: 10, kind: input, shape index: {}]
  %s11 = inlined_call_operand.vmem [shape: f32[32,48], index: 11, kind: input, shape index: {}]
  %s12 = inlined_call_operand.vmem [shape: f32[32,96], index: 12, kind: input, shape index: {}]
  %s13 = inlined_call_operand.vmem [shape: f32[4,32,8], index: 13, kind: output, shape index: {}]
  %s14 = sld [smem:[#allocation0]]
  $region62: #{resnet1d_forward.2} parent=0
    _
  %s16 = ssub.s32 1, %s14
  %s17 = scalar_select 0, %s16, %s14
  // Predicated region
  $region2: #{resnet1d_forward.2} parent=0 // pred_check
    _
  $region3: #{resnet1d_forward.2} parent=0 // pred_check_branch
    %19 = sbr.rel (0) target = $region5
  $region4: #{resnet1d_forward.2} parent=0 // pred_region
    _
  $region5: #{resnet1d_forward.2} parent=0 // pred_fallthru
    _
  // Predicated region
  $region6: #{resnet1d_forward.2} parent=0 // pred_check
    _
  $region7: #{resnet1d_forward.2} parent=0 // pred_check_branch
    %21 = sbr.rel (0) target = $region9
  $region8: #{resnet1d_forward.2} parent=0 // pred_region
    _
  $region9: #{resnet1d_forward.2} parent=0 // pred_fallthru
    _
  // Predicated region
  $region10: #{resnet1d_forward.2} parent=0 // pred_check
    _
  $region11: #{resnet1d_forward.2} parent=0 // pred_check_branch
    %23 = sbr.rel (0) target = $region13
  $region12: #{resnet1d_forward.2} parent=0 // pred_region
    _
  $region13: #{resnet1d_forward.2} parent=0 // pred_fallthru
    _
  // Predicated region
  $region14: #{resnet1d_forward.2} parent=0 // pred_check
    _
  $region15: #{resnet1d_forward.2} parent=0 // pred_check_branch
    %25 = sbr.rel (0) target = $region17
  $region16: #{resnet1d_forward.2} parent=0 // pred_region
    _
  $region17: #{resnet1d_forward.2} parent=0 // pred_fallthru
    _
  // Predicated region
  $region18: #{resnet1d_forward.2} parent=0 // pred_check
    _
  $region19: #{resnet1d_forward.2} parent=0 // pred_check_branch
    %27 = sbr.rel (0) target = $region21
  $region20: #{resnet1d_forward.2} parent=0 // pred_region
    _
  $region21: #{resnet1d_forward.2} parent=0 // pred_fallthru
    _
  // Predicated region
  $region22: #{resnet1d_forward.2} parent=0 // pred_check
    _
  $region23: #{resnet1d_forward.2} parent=0 // pred_check_branch
    %29 = sbr.rel (0) target = $region25
  $region24: #{resnet1d_forward.2} parent=0 // pred_region
    _
  $region25: #{resnet1d_forward.2} parent=0 // pred_fallthru
    _
  // Predicated region
  $region26: #{resnet1d_forward.2} parent=0 // pred_check
    _
  $region27: #{resnet1d_forward.2} parent=0 // pred_check_branch
    %31 = sbr.rel (0) target = $region29
  $region28: #{resnet1d_forward.2} parent=0 // pred_region
    _
  $region29: #{resnet1d_forward.2} parent=0 // pred_fallthru
    _
  // Predicated region
  $region30: #{resnet1d_forward.2} parent=0 // pred_check
    _
  $region31: #{resnet1d_forward.2} parent=0 // pred_check_branch
    %33 = sbr.rel (0) target = $region33
  $region32: #{resnet1d_forward.2} parent=0 // pred_region
    _
  $region33: #{resnet1d_forward.2} parent=0 // pred_fallthru
    _
  // Predicated region
  $region34: #{resnet1d_forward.2} parent=0 // pred_check
    _
  $region35: #{resnet1d_forward.2} parent=0 // pred_check_branch
    %35 = sbr.rel (0) target = $region37
  $region36: #{resnet1d_forward.2} parent=0 // pred_region
    _
  $region37: #{resnet1d_forward.2} parent=0 // pred_fallthru
    _
  // Predicated region
  $region38: #{resnet1d_forward.2} parent=0 // pred_check
    _
  $region39: #{resnet1d_forward.2} parent=0 // pred_check_branch
    %37 = sbr.rel (0) target = $region41
  $region40: #{resnet1d_forward.2} parent=0 // pred_region
    _
  $region41: #{resnet1d_forward.2} parent=0 // pred_fallthru
    _
  // Predicated region
  $region42: #{resnet1d_forward.2} parent=0 // pred_check
    _
  $region43: #{resnet1d_forward.2} parent=0 // pred_check_branch
    %39 = sbr.rel (0) target = $region45
  $region44: #{resnet1d_forward.2} parent=0 // pred_region
    _
  $region45: #{resnet1d_forward.2} parent=0 // pred_fallthru
    _
  // Predicated region
  $region46: #{resnet1d_forward.2} parent=0 // pred_check
    _
  $region47: #{resnet1d_forward.2} parent=0 // pred_check_branch
    %41 = sbr.rel (0) target = $region49
  $region48: #{resnet1d_forward.2} parent=0 // pred_region
    _
  $region49: #{resnet1d_forward.2} parent=0 // pred_fallthru
    _
  // Predicated region
  $region50: #{resnet1d_forward.2} parent=0 // pred_check
    _
  $region51: #{resnet1d_forward.2} parent=0 // pred_check_branch
    %43 = sbr.rel (0) target = $region53
  $region52: #{resnet1d_forward.2} parent=0 // pred_region
    _
  $region53: #{resnet1d_forward.2} parent=0 // pred_fallthru
    _
  %v44 = vld [vmem:[%s1] sm:$0x3]
  %v45 = vld [vmem:[%s2] sm:$0x3]
  %v46 = vld [vmem:[%s0] sm:$0xff]
  %v48 = vcombine.high %v46, %v46
  %49 = vrot.lane.b32.xlu0 %v46, 1
  %v50 = vpop.permute.xlu0 %49
  %51 = vrot.lane.b32.xlu0 %v48, 1
  %v52 = vpop.permute.xlu0 %51
  %vm53 = vcmask 7168
  %v54 = vsel %vm53, %v50, %v52
  %v57 = vsel %vm53, 0.0, %v50
  %v59 = vlaneseq
  %v60 = vshrl.u32 %v59, 7
  %v61 = vsub.s32 0, %v60
  %v62 = vrot.slane %v44, %v61
  %v63 = vlaneseq
  %v64 = vshrl.u32 %v63, 7
  %v65 = vsub.s32 1, %v64
  %v66 = vrot.slane %v44, %v65
  %v69 = vmul.f32 %v57, %v62
  %v70 = vmul.f32 %v54, %v66
  %71 = vrot.lane.b32.xlu0 %v46, 127
  %v72 = vpop.permute.xlu0 %71
  %73 = vrot.lane.b32.xlu0 %v48, 127
  %v74 = vpop.permute.xlu0 %73
  %vm75 = vcmask 1039360
  %v76 = vsel %vm75, %v72, %v74
  %v79 = vsel %vm75, %v74, 0.0
  %v81 = vlaneseq
  %v82 = vshrl.u32 %v81, 7
  %v83 = vsub.s32 0, %v82
  %v84 = vrot.slane %v45, %v83
  %v85 = vlaneseq
  %v86 = vshrl.u32 %v85, 7
  %v87 = vsub.s32 1, %v86
  %v88 = vrot.slane %v45, %v87
  %v91 = vmul.f32 %v76, %v84
  %v92 = vmul.f32 %v79, %v88
  %v93 = vcombine.low %v46, %v46
  %vm95 = vcmask 1043456
  %v96 = vsel %vm95, %v69, %v93
  %v97 = vsel %vm95, %v70, %v46
  %v98 = vld [vmem:[%s4] sm:$0xff]
  %vm99 = vcmask 97280
  %v101 = vsel %vm99, %v98, 0
  %v104 = vsel %vm95, %v91, 0
  %v107 = vsel %vm95, %v92, 0
  %109 = vmatprep.subr.mxu0 %v97
  %110 = vmatpush1.msra.mxu0 %v96
  %111 = vmatprep.subr.mxu0 %v107
  %112 = vmatpush1.msra.mxu0 %v104
  %113 = vmatprep.subr.mxu0 0.0
  %114 = vmatpush1.msra.mxu0 0.0
  %115 = vmatprep.subr.mxu0 0.0
  %116 = vmatpush1.msra.mxu0 0.0
  %117 = vmatprep.subr.mxu0 0.0
  %118 = vmatpush1.msra.mxu0 0.0
  %119 = vmatprep.subr.mxu0 0.0
  %120 = vmatpush1.msra.mxu0 0.0
  %121 = vmatprep.subr.mxu0 0.0
  %122 = vmatpush1.msra.mxu0 0.0
  %123 = vmatprep.subr.mxu0 0.0
  %124 = vmatpush1.msra.mxu0 0.0
  %125 = vmatprep.subr.mxu0 0.0
  %126 = vmatpush1.msra.mxu0 0.0
  %127 = vmatprep.subr.mxu0 0.0
  %128 = vmatpush1.msra.mxu0 0.0
  %129 = vmatprep.subr.mxu0 0.0
  %130 = vmatpush1.msra.mxu0 0.0
  %131 = vmatprep.subr.mxu0 0.0
  %132 = vmatpush1.msra.mxu0 0.0
  %133 = vmatprep.subr.mxu0 0.0
  %134 = vmatpush1.msra.mxu0 0.0
  %135 = vmatprep.subr.mxu0 0.0
  %136 = vmatpush1.msra.mxu0 0.0
  %137 = vmatprep.subr.mxu0 0.0
  %138 = vmatpush1.msra.mxu0 0.0
  %139 = vmatprep.subr.mxu0 0.0
  %140 = vmatpush1.msra.mxu0 0.0
  %141 = vmatprep.subr.mxu0 0.0
  %142 = vmatpush1.msra.mxu0 0.0
  %143 = vmatprep.subr.mxu0 0.0
  %144 = vmatpush1.msra.mxu0 0.0
  %145 = vmatprep.subr.mxu0 0.0
  %146 = vmatpush1.msra.mxu0 0.0
  %147 = vmatprep.subr.mxu0 0.0
  %148 = vmatpush1.msra.mxu0 0.0
  %149 = vmatprep.subr.mxu0 0.0
  %150 = vmatpush1.msra.mxu0 0.0
  %151 = vmatprep.subr.mxu0 0.0
  %152 = vmatpush1.msra.mxu0 0.0
  %153 = vmatprep.subr.mxu0 0.0
  %154 = vmatpush1.msra.mxu0 0.0
  %155 = vmatprep.subr.mxu0 0.0
  %156 = vmatpush1.msra.mxu0 0.0
  %157 = vmatprep.subr.mxu0 0.0
  %158 = vmatpush1.msra.mxu0 0.0
  %159 = vmatprep.subr.mxu0 0.0
  %160 = vmatpush1.msra.mxu0 0.0
  %161 = vmatprep.subr.mxu0 0.0
  %162 = vmatpush1.msra.mxu0 0.0
  %163 = vmatprep.subr.mxu0 0.0
  %164 = vmatpush1.msra.mxu0 0.0
  %165 = vmatprep.subr.mxu0 0.0
  %166 = vmatpush1.msra.mxu0 0.0
  %167 = vmatprep.subr.mxu0 0.0
  %168 = vmatpush1.msra.mxu0 0.0
  %169 = vmatprep.subr.mxu0 0.0
  %170 = vmatpush1.msra.mxu0 0.0
  %171 = vmatprep.subr.mxu0 0.0
  %172 = vmatpush1.msra.mxu0 0.0
  %173 = vmatprep.mubr.f32.mxu0 0.0
  %174 = vmatmul.mubr.f32.gmra.mrb[0].mxu0 %v101
  %v175 = vpop.f32.mrb[0].mxu0
  %v176 = vadd.f32 0.0, %v175
  %v177 = vpop.f32.mrb[0].mxu0
  %v178 = vadd.f32 0.0, %v177
  %179 = vdwg.mxu0
  %v180 = vmax.f32 %v176, 0.0
  %v181 = vmax.f32 %v178, 0.0
  %184 = vrot.lane.b32.xlu0 %v180, 1
  %v185 = vpop.permute.xlu0 %184
  %186 = vrot.lane.b32.xlu0 %v181, 1
  %v187 = vpop.permute.xlu0 %186
  %v188 = vsel %vm53, %v185, %v187
  %v191 = vsel %vm53, 0.0, %v185
  %v192 = vmul.f32 %v191, %v62
  %v193 = vmul.f32 %v188, %v66
  %194 = vrot.lane.b32.xlu0 %v180, 127
  %v195 = vpop.permute.xlu0 %194
  %196 = vrot.lane.b32.xlu0 %v181, 127
  %v197 = vpop.permute.xlu0 %196
  %v198 = vsel %vm75, %v195, %v197
  %v201 = vsel %vm75, %v197, 0.0
  %v202 = vmul.f32 %v198, %v84
  %v203 = vmul.f32 %v201, %v88
  %v204 = vld [vmem:[%s5] sm:$0xff]
  %vm205 = vcmask 195584
  %v207 = vsel %vm205, %v204, 0
  %209 = vmatprep.subr.mxu0 %v193
  %210 = vmatpush1.msra.mxu0 %v192
  %211 = vmatprep.subr.mxu0 %v181
  %212 = vmatpush1.msra.mxu0 %v180
  %213 = vmatprep.subr.mxu0 %v203
  %214 = vmatpush1.msra.mxu0 %v202
  %215 = vmatprep.subr.mxu0 0.0
  %216 = vmatpush1.msra.mxu0 0.0
  %217 = vmatprep.subr.mxu0 0.0
  %218 = vmatpush1.msra.mxu0 0.0
  %219 = vmatprep.subr.mxu0 0.0
  %220 = vmatpush1.msra.mxu0 0.0
  %221 = vmatprep.subr.mxu0 0.0
  %222 = vmatpush1.msra.mxu0 0.0
  %223 = vmatprep.subr.mxu0 0.0
  %224 = vmatpush1.msra.mxu0 0.0
  %225 = vmatprep.subr.mxu0 0.0
  %226 = vmatpush1.msra.mxu0 0.0
  %227 = vmatprep.subr.mxu0 0.0
  %228 = vmatpush1.msra.mxu0 0.0
  %229 = vmatprep.subr.mxu0 0.0
  %230 = vmatpush1.msra.mxu0 0.0
  %231 = vmatprep.subr.mxu0 0.0
  %232 = vmatpush1.msra.mxu0 0.0
  %233 = vmatprep.subr.mxu0 0.0
  %234 = vmatpush1.msra.mxu0 0.0
  %235 = vmatprep.subr.mxu0 0.0
  %236 = vmatpush1.msra.mxu0 0.0
  %237 = vmatprep.subr.mxu0 0.0
  %238 = vmatpush1.msra.mxu0 0.0
  %239 = vmatprep.subr.mxu0 0.0
  %240 = vmatpush1.msra.mxu0 0.0
  %241 = vmatprep.subr.mxu0 0.0
  %242 = vmatpush1.msra.mxu0 0.0
  %243 = vmatprep.subr.mxu0 0.0
  %244 = vmatpush1.msra.mxu0 0.0
  %245 = vmatprep.subr.mxu0 0.0
  %246 = vmatpush1.msra.mxu0 0.0
  %247 = vmatprep.subr.mxu0 0.0
  %248 = vmatpush1.msra.mxu0 0.0
  %249 = vmatprep.subr.mxu0 0.0
  %250 = vmatpush1.msra.mxu0 0.0
  %251 = vmatprep.subr.mxu0 0.0
  %252 = vmatpush1.msra.mxu0 0.0
  %253 = vmatprep.subr.mxu0 0.0
  %254 = vmatpush1.msra.mxu0 0.0
  %255 = vmatprep.subr.mxu0 0.0
  %256 = vmatpush1.msra.mxu0 0.0
  %257 = vmatprep.subr.mxu0 0.0
  %258 = vmatpush1.msra.mxu0 0.0
  %259 = vmatprep.subr.mxu0 0.0
  %260 = vmatpush1.msra.mxu0 0.0
  %261 = vmatprep.subr.mxu0 0.0
  %262 = vmatpush1.msra.mxu0 0.0
  %263 = vmatprep.subr.mxu0 0.0
  %264 = vmatpush1.msra.mxu0 0.0
  %265 = vmatprep.subr.mxu0 0.0
  %266 = vmatpush1.msra.mxu0 0.0
  %267 = vmatprep.subr.mxu0 0.0
  %268 = vmatpush1.msra.mxu0 0.0
  %269 = vmatprep.subr.mxu0 0.0
  %270 = vmatpush1.msra.mxu0 0.0
  %271 = vmatprep.subr.mxu0 0.0
  %272 = vmatpush1.msra.mxu0 0.0
  %273 = vmatprep.mubr.f32.mxu0 0.0
  %274 = vmatmul.mubr.f32.gmra.mrb[0].mxu0 %v207
  %v275 = vpop.f32.mrb[0].mxu0
  %v276 = vadd.f32 0.0, %v275
  %v277 = vpop.f32.mrb[0].mxu0
  %v278 = vadd.f32 0.0, %v277
  %279 = vdwg.mxu0
  %v280 = vmax.f32 %v276, 0.0
  %v281 = vmax.f32 %v278, 0.0
  %284 = vrot.lane.b32.xlu0 %v280, 1
  %v285 = vpop.permute.xlu0 %284
  %286 = vrot.lane.b32.xlu0 %v281, 1
  %v287 = vpop.permute.xlu0 %286
  %v288 = vsel %vm53, %v285, %v287
  %v291 = vsel %vm53, 0.0, %v285
  %v292 = vmul.f32 %v291, %v62
  %v293 = vmul.f32 %v288, %v66
  %294 = vrot.lane.b32.xlu0 %v280, 127
  %v295 = vpop.permute.xlu0 %294
  %296 = vrot.lane.b32.xlu0 %v281, 127
  %v297 = vpop.permute.xlu0 %296
  %v298 = vsel %vm75, %v295, %v297
  %v301 = vsel %vm75, %v297, 0.0
  %v302 = vmul.f32 %v298, %v84
  %v303 = vmul.f32 %v301, %v88
  %v304 = vld [vmem:[%s6] sm:$0xff]
  %v306 = vsel %vm205, %v304, 0
  %308 = vmatprep.subr.mxu0 %v293
  %309 = vmatpush1.msra.mxu0 %v292
  %310 = vmatprep.subr.mxu0 %v281
  %311 = vmatpush1.msra.mxu0 %v280
  %312 = vmatprep.subr.mxu0 %v303
  %313 = vmatpush1.msra.mxu0 %v302
  %314 = vmatprep.subr.mxu0 0.0
  %315 = vmatpush1.msra.mxu0 0.0
  %316 = vmatprep.subr.mxu0 0.0
  %317 = vmatpush1.msra.mxu0 0.0
  %318 = vmatprep.subr.mxu0 0.0
  %319 = vmatpush1.msra.mxu0 0.0
  %320 = vmatprep.subr.mxu0 0.0
  %321 = vmatpush1.msra.mxu0 0.0
  %322 = vmatprep.subr.mxu0 0.0
  %323 = vmatpush1.msra.mxu0 0.0
  %324 = vmatprep.subr.mxu0 0.0
  %325 = vmatpush1.msra.mxu0 0.0
  %326 = vmatprep.subr.mxu0 0.0
  %327 = vmatpush1.msra.mxu0 0.0
  %328 = vmatprep.subr.mxu0 0.0
  %329 = vmatpush1.msra.mxu0 0.0
  %330 = vmatprep.subr.mxu0 0.0
  %331 = vmatpush1.msra.mxu0 0.0
  %332 = vmatprep.subr.mxu0 0.0
  %333 = vmatpush1.msra.mxu0 0.0
  %334 = vmatprep.subr.mxu0 0.0
  %335 = vmatpush1.msra.mxu0 0.0
  %336 = vmatprep.subr.mxu0 0.0
  %337 = vmatpush1.msra.mxu0 0.0
  %338 = vmatprep.subr.mxu0 0.0
  %339 = vmatpush1.msra.mxu0 0.0
  %340 = vmatprep.subr.mxu0 0.0
  %341 = vmatpush1.msra.mxu0 0.0
  %342 = vmatprep.subr.mxu0 0.0
  %343 = vmatpush1.msra.mxu0 0.0
  %344 = vmatprep.subr.mxu0 0.0
  %345 = vmatpush1.msra.mxu0 0.0
  %346 = vmatprep.subr.mxu0 0.0
  %347 = vmatpush1.msra.mxu0 0.0
  %348 = vmatprep.subr.mxu0 0.0
  %349 = vmatpush1.msra.mxu0 0.0
  %350 = vmatprep.subr.mxu0 0.0
  %351 = vmatpush1.msra.mxu0 0.0
  %352 = vmatprep.subr.mxu0 0.0
  %353 = vmatpush1.msra.mxu0 0.0
  %354 = vmatprep.subr.mxu0 0.0
  %355 = vmatpush1.msra.mxu0 0.0
  %356 = vmatprep.subr.mxu0 0.0
  %357 = vmatpush1.msra.mxu0 0.0
  %358 = vmatprep.subr.mxu0 0.0
  %359 = vmatpush1.msra.mxu0 0.0
  %360 = vmatprep.subr.mxu0 0.0
  %361 = vmatpush1.msra.mxu0 0.0
  %362 = vmatprep.subr.mxu0 0.0
  %363 = vmatpush1.msra.mxu0 0.0
  %364 = vmatprep.subr.mxu0 0.0
  %365 = vmatpush1.msra.mxu0 0.0
  %366 = vmatprep.subr.mxu0 0.0
  %367 = vmatpush1.msra.mxu0 0.0
  %368 = vmatprep.subr.mxu0 0.0
  %369 = vmatpush1.msra.mxu0 0.0
  %370 = vmatprep.subr.mxu0 0.0
  %371 = vmatpush1.msra.mxu0 0.0
  %372 = vmatprep.mubr.f32.mxu0 0.0
  %373 = vmatmul.mubr.f32.gmra.mrb[0].mxu0 %v306
  %v374 = vpop.f32.mrb[0].mxu0
  %v375 = vadd.f32 %v180, %v374
  %v376 = vpop.f32.mrb[0].mxu0
  %v377 = vadd.f32 %v181, %v376
  %378 = vdwg.mxu0
  %v379 = vmax.f32 %v375, 0.0
  %v380 = vmax.f32 %v377, 0.0
  %383 = vrot.lane.b32.xlu0 %v379, 1
  %v384 = vpop.permute.xlu0 %383
  %385 = vrot.lane.b32.xlu0 %v380, 1
  %v386 = vpop.permute.xlu0 %385
  %v387 = vsel %vm53, %v384, %v386
  %v390 = vsel %vm53, 0.0, %v384
  %v391 = vmul.f32 %v390, %v62
  %v392 = vmul.f32 %v387, %v66
  %393 = vrot.lane.b32.xlu0 %v379, 127
  %v394 = vpop.permute.xlu0 %393
  %395 = vrot.lane.b32.xlu0 %v380, 127
  %v396 = vpop.permute.xlu0 %395
  %v397 = vsel %vm75, %v394, %v396
  %v400 = vsel %vm75, %v396, 0.0
  %v401 = vmul.f32 %v397, %v84
  %v402 = vmul.f32 %v400, %v88
  %v403 = vld [vmem:[%s7] sm:$0xff]
  %v404 = vld [vmem:[%s7 + $0x8] sm:$0xff]
  %v406 = vsel %vm205, %v403, 0
  %v409 = vsel %vm205, %v404, 0
  %411 = vmatprep.subr.mxu0 %v392
  %412 = vmatpush1.msra.mxu0 %v391
  %413 = vmatprep.subr.mxu0 %v380
  %414 = vmatpush1.msra.mxu0 %v379
  %415 = vmatprep.subr.mxu0 %v402
  %416 = vmatpush1.msra.mxu0 %v401
  %417 = vmatprep.subr.mxu0 0.0
  %418 = vmatpush1.msra.mxu0 0.0
  %419 = vmatprep.subr.mxu0 0.0
  %420 = vmatpush1.msra.mxu0 0.0
  %421 = vmatprep.subr.mxu0 0.0
  %422 = vmatpush1.msra.mxu0 0.0
  %423 = vmatprep.subr.mxu0 0.0
  %424 = vmatpush1.msra.mxu0 0.0
  %425 = vmatprep.subr.mxu0 0.0
  %426 = vmatpush1.msra.mxu0 0.0
  %427 = vmatprep.subr.mxu0 0.0
  %428 = vmatpush1.msra.mxu0 0.0
  %429 = vmatprep.subr.mxu0 0.0
  %430 = vmatpush1.msra.mxu0 0.0
  %431 = vmatprep.subr.mxu0 0.0
  %432 = vmatpush1.msra.mxu0 0.0
  %433 = vmatprep.subr.mxu0 0.0
  %434 = vmatpush1.msra.mxu0 0.0
  %435 = vmatprep.subr.mxu0 0.0
  %436 = vmatpush1.msra.mxu0 0.0
  %437 = vmatprep.subr.mxu0 0.0
  %438 = vmatpush1.msra.mxu0 0.0
  %439 = vmatprep.subr.mxu0 0.0
  %440 = vmatpush1.msra.mxu0 0.0
  %441 = vmatprep.subr.mxu0 0.0
  %442 = vmatpush1.msra.mxu0 0.0
  %443 = vmatprep.subr.mxu0 0.0
  %444 = vmatpush1.msra.mxu0 0.0
  %445 = vmatprep.subr.mxu0 0.0
  %446 = vmatpush1.msra.mxu0 0.0
  %447 = vmatprep.subr.mxu0 0.0
  %448 = vmatpush1.msra.mxu0 0.0
  %449 = vmatprep.subr.mxu0 0.0
  %450 = vmatpush1.msra.mxu0 0.0
  %451 = vmatprep.subr.mxu0 0.0
  %452 = vmatpush1.msra.mxu0 0.0
  %453 = vmatprep.subr.mxu0 0.0
  %454 = vmatpush1.msra.mxu0 0.0
  %455 = vmatprep.subr.mxu0 0.0
  %456 = vmatpush1.msra.mxu0 0.0
  %457 = vmatprep.subr.mxu0 0.0
  %458 = vmatpush1.msra.mxu0 0.0
  %459 = vmatprep.subr.mxu0 0.0
  %460 = vmatpush1.msra.mxu0 0.0
  %461 = vmatprep.subr.mxu0 0.0
  %462 = vmatpush1.msra.mxu0 0.0
  %463 = vmatprep.subr.mxu0 0.0
  %464 = vmatpush1.msra.mxu0 0.0
  %465 = vmatprep.subr.mxu0 0.0
  %466 = vmatpush1.msra.mxu0 0.0
  %467 = vmatprep.subr.mxu0 0.0
  %468 = vmatpush1.msra.mxu0 0.0
  %469 = vmatprep.subr.mxu0 0.0
  %470 = vmatpush1.msra.mxu0 0.0
  %471 = vmatprep.subr.mxu0 0.0
  %472 = vmatpush1.msra.mxu0 0.0
  %473 = vmatprep.subr.mxu0 0.0
  %474 = vmatpush1.msra.mxu0 0.0
  %475 = vmatprep.mubr.f32.mxu0 0.0
  %476 = vmatmul.mubr.f32.gmra.mrb[0].mxu0 %v406
  %v477 = vpop.f32.mrb[0].mxu0
  %v478 = vadd.f32 0.0, %v477
  %v479 = vpop.f32.mrb[0].mxu0
  %v480 = vadd.f32 0.0, %v479
  %481 = vmatprep.mubr.f32.mxu0 0.0
  %482 = vmatmul.mubr.f32.gmra.mrb[0].mxu0 %v409
  %v483 = vpop.f32.mrb[0].mxu0
  %v484 = vadd.f32 0.0, %v483
  %v485 = vpop.f32.mrb[0].mxu0
  %v486 = vadd.f32 0.0, %v485
  %487 = vdwg.mxu0
  %v488 = vmax.f32 %v478, 0.0
  %v489 = vmax.f32 %v480, 0.0
  %v490 = vmax.f32 %v484, 0.0
  %v491 = vmax.f32 %v486, 0.0
  %v492 = vld [vmem:[%s8] sm:$0xff]
  %v493 = vld [vmem:[%s8 + $0x8] sm:$0xff]
  %v495 = vsel %vm205, %v492, 0
  %v498 = vsel %vm205, %v493, 0
  %500 = vmatprep.subr.mxu0 %v392
  %501 = vmatpush1.msra.mxu0 %v391
  %502 = vmatprep.subr.mxu0 %v380
  %503 = vmatpush1.msra.mxu0 %v379
  %504 = vmatprep.subr.mxu0 %v402
  %505 = vmatpush1.msra.mxu0 %v401
  %506 = vmatprep.subr.mxu0 0.0
  %507 = vmatpush1.msra.mxu0 0.0
  %508 = vmatprep.subr.mxu0 0.0
  %509 = vmatpush1.msra.mxu0 0.0
  %510 = vmatprep.subr.mxu0 0.0
  %511 = vmatpush1.msra.mxu0 0.0
  %512 = vmatprep.subr.mxu0 0.0
  %513 = vmatpush1.msra.mxu0 0.0
  %514 = vmatprep.subr.mxu0 0.0
  %515 = vmatpush1.msra.mxu0 0.0
  %516 = vmatprep.subr.mxu0 0.0
  %517 = vmatpush1.msra.mxu0 0.0
  %518 = vmatprep.subr.mxu0 0.0
  %519 = vmatpush1.msra.mxu0 0.0
  %520 = vmatprep.subr.mxu0 0.0
  %521 = vmatpush1.msra.mxu0 0.0
  %522 = vmatprep.subr.mxu0 0.0
  %523 = vmatpush1.msra.mxu0 0.0
  %524 = vmatprep.subr.mxu0 0.0
  %525 = vmatpush1.msra.mxu0 0.0
  %526 = vmatprep.subr.mxu0 0.0
  %527 = vmatpush1.msra.mxu0 0.0
  %528 = vmatprep.subr.mxu0 0.0
  %529 = vmatpush1.msra.mxu0 0.0
  %530 = vmatprep.subr.mxu0 0.0
  %531 = vmatpush1.msra.mxu0 0.0
  %532 = vmatprep.subr.mxu0 0.0
  %533 = vmatpush1.msra.mxu0 0.0
  %534 = vmatprep.subr.mxu0 0.0
  %535 = vmatpush1.msra.mxu0 0.0
  %536 = vmatprep.subr.mxu0 0.0
  %537 = vmatpush1.msra.mxu0 0.0
  %538 = vmatprep.subr.mxu0 0.0
  %539 = vmatpush1.msra.mxu0 0.0
  %540 = vmatprep.subr.mxu0 0.0
  %541 = vmatpush1.msra.mxu0 0.0
  %542 = vmatprep.subr.mxu0 0.0
  %543 = vmatpush1.msra.mxu0 0.0
  %544 = vmatprep.subr.mxu0 0.0
  %545 = vmatpush1.msra.mxu0 0.0
  %546 = vmatprep.subr.mxu0 0.0
  %547 = vmatpush1.msra.mxu0 0.0
  %548 = vmatprep.subr.mxu0 0.0
  %549 = vmatpush1.msra.mxu0 0.0
  %550 = vmatprep.subr.mxu0 0.0
  %551 = vmatpush1.msra.mxu0 0.0
  %552 = vmatprep.subr.mxu0 0.0
  %553 = vmatpush1.msra.mxu0 0.0
  %554 = vmatprep.subr.mxu0 0.0
  %555 = vmatpush1.msra.mxu0 0.0
  %556 = vmatprep.subr.mxu0 0.0
  %557 = vmatpush1.msra.mxu0 0.0
  %558 = vmatprep.subr.mxu0 0.0
  %559 = vmatpush1.msra.mxu0 0.0
  %560 = vmatprep.subr.mxu0 0.0
  %561 = vmatpush1.msra.mxu0 0.0
  %562 = vmatprep.subr.mxu0 0.0
  %563 = vmatpush1.msra.mxu0 0.0
  %564 = vmatprep.mubr.f32.mxu0 0.0
  %565 = vmatmul.mubr.f32.gmra.mrb[0].mxu0 %v495
  %v566 = vpop.f32.mrb[0].mxu0
  %v567 = vadd.f32 0.0, %v566
  %v568 = vpop.f32.mrb[0].mxu0
  %v569 = vadd.f32 0.0, %v568
  %570 = vmatprep.mubr.f32.mxu0 0.0
  %571 = vmatmul.mubr.f32.gmra.mrb[0].mxu0 %v498
  %v572 = vpop.f32.mrb[0].mxu0
  %v573 = vadd.f32 0.0, %v572
  %v574 = vpop.f32.mrb[0].mxu0
  %v575 = vadd.f32 0.0, %v574
  %576 = vdwg.mxu0
  %581 = vrot.lane.b32.xlu0 %v488, 1
  %v582 = vpop.permute.xlu0 %581
  %583 = vrot.lane.b32.xlu0 %v489, 1
  %v584 = vpop.permute.xlu0 %583
  %585 = vrot.lane.b32.xlu0 %v490, 1
  %v586 = vpop.permute.xlu0 %585
  %587 = vrot.lane.b32.xlu0 %v491, 1
  %v588 = vpop.permute.xlu0 %587
  %v589 = vsel %vm53, %v582, %v584
  %v590 = vsel %vm53, %v586, %v588
  %v595 = vsel %vm53, 0.0, %v582
  %v596 = vsel %vm53, 0.0, %v586
  %v597 = vmul.f32 %v595, %v62
  %v598 = vmul.f32 %v589, %v66
  %v599 = vmul.f32 %v596, %v62
  %v600 = vmul.f32 %v590, %v66
  %601 = vrot.lane.b32.xlu0 %v488, 127
  %v602 = vpop.permute.xlu0 %601
  %603 = vrot.lane.b32.xlu0 %v489, 127
  %v604 = vpop.permute.xlu0 %603
  %605 = vrot.lane.b32.xlu0 %v490, 127
  %v606 = vpop.permute.xlu0 %605
  %607 = vrot.lane.b32.xlu0 %v491, 127
  %v608 = vpop.permute.xlu0 %607
  %v609 = vsel %vm75, %v602, %v604
  %v610 = vsel %vm75, %v606, %v608
  %v615 = vsel %vm75, %v604, 0.0
  %v616 = vsel %vm75, %v608, 0.0
  %v617 = vmul.f32 %v609, %v84
  %v618 = vmul.f32 %v615, %v88
  %v619 = vmul.f32 %v610, %v84
  %v620 = vmul.f32 %v616, %v88
  %v621 = vld [vmem:[%s9] sm:$0xff]
  %v622 = vld [vmem:[%s9 + $0x8] sm:$0xff]
  %vm623 = vcmask 392192
  %v625 = vsel %vm623, %v621, 0
  %v628 = vsel %vm623, %v622, 0
  %630 = vmatprep.subr.mxu0 %v598
  %631 = vmatpush1.msra.mxu0 %v597
  %632 = vmatprep.subr.mxu0 %v600
  %633 = vmatpush1.msra.mxu0 %v599
  %634 = vmatprep.subr.mxu0 %v489
  %635 = vmatpush1.msra.mxu0 %v488
  %636 = vmatprep.subr.mxu0 %v491
  %637 = vmatpush1.msra.mxu0 %v490
  %638 = vmatprep.subr.mxu0 %v618
  %639 = vmatpush1.msra.mxu0 %v617
  %640 = vmatprep.subr.mxu0 %v620
  %641 = vmatpush1.msra.mxu0 %v619
  %642 = vmatprep.subr.mxu0 0.0
  %643 = vmatpush1.msra.mxu0 0.0
  %644 = vmatprep.subr.mxu0 0.0
  %645 = vmatpush1.msra.mxu0 0.0
  %646 = vmatprep.subr.mxu0 0.0
  %647 = vmatpush1.msra.mxu0 0.0
  %648 = vmatprep.subr.mxu0 0.0
  %649 = vmatpush1.msra.mxu0 0.0
  %650 = vmatprep.subr.mxu0 0.0
  %651 = vmatpush1.msra.mxu0 0.0
  %652 = vmatprep.subr.mxu0 0.0
  %653 = vmatpush1.msra.mxu0 0.0
  %654 = vmatprep.subr.mxu0 0.0
  %655 = vmatpush1.msra.mxu0 0.0
  %656 = vmatprep.subr.mxu0 0.0
  %657 = vmatpush1.msra.mxu0 0.0
  %658 = vmatprep.subr.mxu0 0.0
  %659 = vmatpush1.msra.mxu0 0.0
  %660 = vmatprep.subr.mxu0 0.0
  %661 = vmatpush1.msra.mxu0 0.0
  %662 = vmatprep.subr.mxu0 0.0
  %663 = vmatpush1.msra.mxu0 0.0
  %664 = vmatprep.subr.mxu0 0.0
  %665 = vmatpush1.msra.mxu0 0.0
  %666 = vmatprep.subr.mxu0 0.0
  %667 = vmatpush1.msra.mxu0 0.0
  %668 = vmatprep.subr.mxu0 0.0
  %669 = vmatpush1.msra.mxu0 0.0
  %670 = vmatprep.subr.mxu0 0.0
  %671 = vmatpush1.msra.mxu0 0.0
  %672 = vmatprep.subr.mxu0 0.0
  %673 = vmatpush1.msra.mxu0 0.0
  %674 = vmatprep.subr.mxu0 0.0
  %675 = vmatpush1.msra.mxu0 0.0
  %676 = vmatprep.subr.mxu0 0.0
  %677 = vmatpush1.msra.mxu0 0.0
  %678 = vmatprep.subr.mxu0 0.0
  %679 = vmatpush1.msra.mxu0 0.0
  %680 = vmatprep.subr.mxu0 0.0
  %681 = vmatpush1.msra.mxu0 0.0
  %682 = vmatprep.subr.mxu0 0.0
  %683 = vmatpush1.msra.mxu0 0.0
  %684 = vmatprep.subr.mxu0 0.0
  %685 = vmatpush1.msra.mxu0 0.0
  %686 = vmatprep.subr.mxu0 0.0
  %687 = vmatpush1.msra.mxu0 0.0
  %688 = vmatprep.subr.mxu0 0.0
  %689 = vmatpush1.msra.mxu0 0.0
  %690 = vmatprep.subr.mxu0 0.0
  %691 = vmatpush1.msra.mxu0 0.0
  %692 = vmatprep.subr.mxu0 0.0
  %693 = vmatpush1.msra.mxu0 0.0
  %694 = vmatprep.mubr.f32.mxu0 0.0
  %695 = vmatmul.mubr.f32.gmra.mrb[0].mxu0 %v625
  %v696 = vpop.f32.mrb[0].mxu0
  %v697 = vadd.f32 %v567, %v696
  %v698 = vpop.f32.mrb[0].mxu0
  %v699 = vadd.f32 %v569, %v698
  %700 = vmatprep.mubr.f32.mxu0 0.0
  %701 = vmatmul.mubr.f32.gmra.mrb[0].mxu0 %v628
  %v702 = vpop.f32.mrb[0].mxu0
  %v703 = vadd.f32 %v573, %v702
  %v704 = vpop.f32.mrb[0].mxu0
  %v705 = vadd.f32 %v575, %v704
  %706 = vdwg.mxu0
  %v707 = vmax.f32 %v697, 0.0
  %v708 = vmax.f32 %v699, 0.0
  %v709 = vmax.f32 %v703, 0.0
  %v710 = vmax.f32 %v705, 0.0
  %715 = vrot.lane.b32.xlu0 %v707, 1
  %v716 = vpop.permute.xlu0 %715
  %717 = vrot.lane.b32.xlu0 %v708, 1
  %v718 = vpop.permute.xlu0 %717
  %719 = vrot.lane.b32.xlu0 %v709, 1
  %v720 = vpop.permute.xlu0 %719
  %721 = vrot.lane.b32.xlu0 %v710, 1
  %v722 = vpop.permute.xlu0 %721
  %v723 = vsel %vm53, %v716, %v718
  %v724 = vsel %vm53, %v720, %v722
  %v729 = vsel %vm53, 0.0, %v716
  %v730 = vsel %vm53, 0.0, %v720
  %v731 = vmul.f32 %v729, %v62
  %v732 = vmul.f32 %v723, %v66
  %v733 = vmul.f32 %v730, %v62
  %v734 = vmul.f32 %v724, %v66
  %735 = vrot.lane.b32.xlu0 %v707, 127
  %v736 = vpop.permute.xlu0 %735
  %737 = vrot.lane.b32.xlu0 %v708, 127
  %v738 = vpop.permute.xlu0 %737
  %739 = vrot.lane.b32.xlu0 %v709, 127
  %v740 = vpop.permute.xlu0 %739
  %741 = vrot.lane.b32.xlu0 %v710, 127
  %v742 = vpop.permute.xlu0 %741
  %v743 = vsel %vm75, %v736, %v738
  %v744 = vsel %vm75, %v740, %v742
  %v749 = vsel %vm75, %v738, 0.0
  %v750 = vsel %vm75, %v742, 0.0
  %v751 = vmul.f32 %v743, %v84
  %v752 = vmul.f32 %v749, %v88
  %v753 = vmul.f32 %v744, %v84
  %v754 = vmul.f32 %v750, %v88
  %v755 = vld [vmem:[%s10] sm:$0xff]
  %v756 = vld [vmem:[%s10 + $0x8] sm:$0xff]
  %v757 = vld [vmem:[%s10 + $0x10] sm:$0xff]
  %v758 = vld [vmem:[%s10 + $0x18] sm:$0xff]
  %v760 = vsel %vm623, %v755, 0
  %v763 = vsel %vm623, %v756, 0
  %v766 = vsel %vm623, %v757, 0
  %v769 = vsel %vm623, %v758, 0
  %771 = vmatprep.subr.mxu0 %v732
  %772 = vmatpush1.msra.mxu0 %v731
  %773 = vmatprep.subr.mxu0 %v734
  %774 = vmatpush1.msra.mxu0 %v733
  %775 = vmatprep.subr.mxu0 %v708
  %776 = vmatpush1.msra.mxu0 %v707
  %777 = vmatprep.subr.mxu0 %v710
  %778 = vmatpush1.msra.mxu0 %v709
  %779 = vmatprep.subr.mxu0 %v752
  %780 = vmatpush1.msra.mxu0 %v751
  %781 = vmatprep.subr.mxu0 %v754
  %782 = vmatpush1.msra.mxu0 %v753
  %783 = vmatprep.subr.mxu0 0.0
  %784 = vmatpush1.msra.mxu0 0.0
  %785 = vmatprep.subr.mxu0 0.0
  %786 = vmatpush1.msra.mxu0 0.0
  %787 = vmatprep.subr.mxu0 0.0
  %788 = vmatpush1.msra.mxu0 0.0
  %789 = vmatprep.subr.mxu0 0.0
  %790 = vmatpush1.msra.mxu0 0.0
  %791 = vmatprep.subr.mxu0 0.0
  %792 = vmatpush1.msra.mxu0 0.0
  %793 = vmatprep.subr.mxu0 0.0
  %794 = vmatpush1.msra.mxu0 0.0
  %795 = vmatprep.subr.mxu0 0.0
  %796 = vmatpush1.msra.mxu0 0.0
  %797 = vmatprep.subr.mxu0 0.0
  %798 = vmatpush1.msra.mxu0 0.0
  %799 = vmatprep.subr.mxu0 0.0
  %800 = vmatpush1.msra.mxu0 0.0
  %801 = vmatprep.subr.mxu0 0.0
  %802 = vmatpush1.msra.mxu0 0.0
  %803 = vmatprep.subr.mxu0 0.0
  %804 = vmatpush1.msra.mxu0 0.0
  %805 = vmatprep.subr.mxu0 0.0
  %806 = vmatpush1.msra.mxu0 0.0
  %807 = vmatprep.subr.mxu0 0.0
  %808 = vmatpush1.msra.mxu0 0.0
  %809 = vmatprep.subr.mxu0 0.0
  %810 = vmatpush1.msra.mxu0 0.0
  %811 = vmatprep.subr.mxu0 0.0
  %812 = vmatpush1.msra.mxu0 0.0
  %813 = vmatprep.subr.mxu0 0.0
  %814 = vmatpush1.msra.mxu0 0.0
  %815 = vmatprep.subr.mxu0 0.0
  %816 = vmatpush1.msra.mxu0 0.0
  %817 = vmatprep.subr.mxu0 0.0
  %818 = vmatpush1.msra.mxu0 0.0
  %819 = vmatprep.subr.mxu0 0.0
  %820 = vmatpush1.msra.mxu0 0.0
  %821 = vmatprep.subr.mxu0 0.0
  %822 = vmatpush1.msra.mxu0 0.0
  %823 = vmatprep.subr.mxu0 0.0
  %824 = vmatpush1.msra.mxu0 0.0
  %825 = vmatprep.subr.mxu0 0.0
  %826 = vmatpush1.msra.mxu0 0.0
  %827 = vmatprep.subr.mxu0 0.0
  %828 = vmatpush1.msra.mxu0 0.0
  %829 = vmatprep.subr.mxu0 0.0
  %830 = vmatpush1.msra.mxu0 0.0
  %831 = vmatprep.subr.mxu0 0.0
  %832 = vmatpush1.msra.mxu0 0.0
  %833 = vmatprep.subr.mxu0 0.0
  %834 = vmatpush1.msra.mxu0 0.0
  %835 = vmatprep.mubr.f32.mxu0 0.0
  %836 = vmatmul.mubr.f32.gmra.mrb[0].mxu0 %v760
  %v837 = vpop.f32.mrb[0].mxu0
  %v838 = vadd.f32 0.0, %v837
  %v839 = vpop.f32.mrb[0].mxu0
  %v840 = vadd.f32 0.0, %v839
  %841 = vmatprep.mubr.f32.mxu0 0.0
  %842 = vmatmul.mubr.f32.gmra.mrb[0].mxu0 %v763
  %v843 = vpop.f32.mrb[0].mxu0
  %v844 = vadd.f32 0.0, %v843
  %v845 = vpop.f32.mrb[0].mxu0
  %v846 = vadd.f32 0.0, %v845
  %847 = vmatprep.mubr.f32.mxu0 0.0
  %848 = vmatmul.mubr.f32.gmra.mrb[0].mxu0 %v766
  %v849 = vpop.f32.mrb[0].mxu0
  %v850 = vadd.f32 0.0, %v849
  %v851 = vpop.f32.mrb[0].mxu0
  %v852 = vadd.f32 0.0, %v851
  %853 = vmatprep.mubr.f32.mxu0 0.0
  %854 = vmatmul.mubr.f32.gmra.mrb[0].mxu0 %v769
  %v855 = vpop.f32.mrb[0].mxu0
  %v856 = vadd.f32 0.0, %v855
  %v857 = vpop.f32.mrb[0].mxu0
  %v858 = vadd.f32 0.0, %v857
  %859 = vdwg.mxu0
  %v860 = vmax.f32 %v838, 0.0
  %v861 = vmax.f32 %v840, 0.0
  %v862 = vmax.f32 %v844, 0.0
  %v863 = vmax.f32 %v846, 0.0
  %v864 = vmax.f32 %v850, 0.0
  %v865 = vmax.f32 %v852, 0.0
  %v866 = vmax.f32 %v856, 0.0
  %v867 = vmax.f32 %v858, 0.0
  %v868 = vld [vmem:[%s11] sm:$0xff]
  %v869 = vld [vmem:[%s11 + $0x8] sm:$0xff]
  %v870 = vld [vmem:[%s11 + $0x10] sm:$0xff]
  %v871 = vld [vmem:[%s11 + $0x18] sm:$0xff]
  %v873 = vsel %vm623, %v868, 0
  %v876 = vsel %vm623, %v869, 0
  %v879 = vsel %vm623, %v870, 0
  %v882 = vsel %vm623, %v871, 0
  %884 = vmatprep.subr.mxu0 %v732
  %885 = vmatpush1.msra.mxu0 %v731
  %886 = vmatprep.subr.mxu0 %v734
  %887 = vmatpush1.msra.mxu0 %v733
  %888 = vmatprep.subr.mxu0 %v708
  %889 = vmatpush1.msra.mxu0 %v707
  %890 = vmatprep.subr.mxu0 %v710
  %891 = vmatpush1.msra.mxu0 %v709
  %892 = vmatprep.subr.mxu0 %v752
  %893 = vmatpush1.msra.mxu0 %v751
  %894 = vmatprep.subr.mxu0 %v754
  %895 = vmatpush1.msra.mxu0 %v753
  %896 = vmatprep.subr.mxu0 0.0
  %897 = vmatpush1.msra.mxu0 0.0
  %898 = vmatprep.subr.mxu0 0.0
  %899 = vmatpush1.msra.mxu0 0.0
  %900 = vmatprep.subr.mxu0 0.0
  %901 = vmatpush1.msra.mxu0 0.0
  %902 = vmatprep.subr.mxu0 0.0
  %903 = vmatpush1.msra.mxu0 0.0
  %904 = vmatprep.subr.mxu0 0.0
  %905 = vmatpush1.msra.mxu0 0.0
  %906 = vmatprep.subr.mxu0 0.0
  %907 = vmatpush1.msra.mxu0 0.0
  %908 = vmatprep.subr.mxu0 0.0
  %909 = vmatpush1.msra.mxu0 0.0
  %910 = vmatprep.subr.mxu0 0.0
  %911 = vmatpush1.msra.mxu0 0.0
  %912 = vmatprep.subr.mxu0 0.0
  %913 = vmatpush1.msra.mxu0 0.0
  %914 = vmatprep.subr.mxu0 0.0
  %915 = vmatpush1.msra.mxu0 0.0
  %916 = vmatprep.subr.mxu0 0.0
  %917 = vmatpush1.msra.mxu0 0.0
  %918 = vmatprep.subr.mxu0 0.0
  %919 = vmatpush1.msra.mxu0 0.0
  %920 = vmatprep.subr.mxu0 0.0
  %921 = vmatpush1.msra.mxu0 0.0
  %922 = vmatprep.subr.mxu0 0.0
  %923 = vmatpush1.msra.mxu0 0.0
  %924 = vmatprep.subr.mxu0 0.0
  %925 = vmatpush1.msra.mxu0 0.0
  %926 = vmatprep.subr.mxu0 0.0
  %927 = vmatpush1.msra.mxu0 0.0
  %928 = vmatprep.subr.mxu0 0.0
  %929 = vmatpush1.msra.mxu0 0.0
  %930 = vmatprep.subr.mxu0 0.0
  %931 = vmatpush1.msra.mxu0 0.0
  %932 = vmatprep.subr.mxu0 0.0
  %933 = vmatpush1.msra.mxu0 0.0
  %934 = vmatprep.subr.mxu0 0.0
  %935 = vmatpush1.msra.mxu0 0.0
  %936 = vmatprep.subr.mxu0 0.0
  %937 = vmatpush1.msra.mxu0 0.0
  %938 = vmatprep.subr.mxu0 0.0
  %939 = vmatpush1.msra.mxu0 0.0
  %940 = vmatprep.subr.mxu0 0.0
  %941 = vmatpush1.msra.mxu0 0.0
  %942 = vmatprep.subr.mxu0 0.0
  %943 = vmatpush1.msra.mxu0 0.0
  %944 = vmatprep.subr.mxu0 0.0
  %945 = vmatpush1.msra.mxu0 0.0
  %946 = vmatprep.subr.mxu0 0.0
  %947 = vmatpush1.msra.mxu0 0.0
  %948 = vmatprep.mubr.f32.mxu0 0.0
  %949 = vmatmul.mubr.f32.gmra.mrb[0].mxu0 %v873
  %v950 = vpop.f32.mrb[0].mxu0
  %v951 = vadd.f32 0.0, %v950
  %v952 = vpop.f32.mrb[0].mxu0
  %v953 = vadd.f32 0.0, %v952
  %954 = vmatprep.mubr.f32.mxu0 0.0
  %955 = vmatmul.mubr.f32.gmra.mrb[0].mxu0 %v876
  %v956 = vpop.f32.mrb[0].mxu0
  %v957 = vadd.f32 0.0, %v956
  %v958 = vpop.f32.mrb[0].mxu0
  %v959 = vadd.f32 0.0, %v958
  %960 = vmatprep.mubr.f32.mxu0 0.0
  %961 = vmatmul.mubr.f32.gmra.mrb[0].mxu0 %v879
  %v962 = vpop.f32.mrb[0].mxu0
  %v963 = vadd.f32 0.0, %v962
  %v964 = vpop.f32.mrb[0].mxu0
  %v965 = vadd.f32 0.0, %v964
  %966 = vmatprep.mubr.f32.mxu0 0.0
  %967 = vmatmul.mubr.f32.gmra.mrb[0].mxu0 %v882
  %v968 = vpop.f32.mrb[0].mxu0
  %v969 = vadd.f32 0.0, %v968
  %v970 = vpop.f32.mrb[0].mxu0
  %v971 = vadd.f32 0.0, %v970
  %972 = vdwg.mxu0
  %981 = vrot.lane.b32.xlu0 %v860, 1
  %v982 = vpop.permute.xlu0 %981
  %983 = vrot.lane.b32.xlu0 %v861, 1
  %v984 = vpop.permute.xlu0 %983
  %985 = vrot.lane.b32.xlu0 %v862, 1
  %v986 = vpop.permute.xlu0 %985
  %987 = vrot.lane.b32.xlu0 %v863, 1
  %v988 = vpop.permute.xlu0 %987
  %989 = vrot.lane.b32.xlu0 %v864, 1
  %v990 = vpop.permute.xlu0 %989
  %991 = vrot.lane.b32.xlu0 %v865, 1
  %v992 = vpop.permute.xlu0 %991
  %993 = vrot.lane.b32.xlu0 %v866, 1
  %v994 = vpop.permute.xlu0 %993
  %995 = vrot.lane.b32.xlu0 %v867, 1
  %v996 = vpop.permute.xlu0 %995
  %v997 = vsel %vm53, %v982, %v984
  %v998 = vsel %vm53, %v986, %v988
  %v999 = vsel %vm53, %v990, %v992
  %v1000 = vsel %vm53, %v994, %v996
  %v1009 = vsel %vm53, 0.0, %v982
  %v1010 = vsel %vm53, 0.0, %v986
  %v1011 = vsel %vm53, 0.0, %v990
  %v1012 = vsel %vm53, 0.0, %v994
  %v1013 = vmul.f32 %v1009, %v62
  %v1014 = vmul.f32 %v997, %v66
  %v1015 = vmul.f32 %v1010, %v62
  %v1016 = vmul.f32 %v998, %v66
  %v1017 = vmul.f32 %v1011, %v62
  %v1018 = vmul.f32 %v999, %v66
  %v1019 = vmul.f32 %v1012, %v62
  %v1020 = vmul.f32 %v1000, %v66
  %1021 = vrot.lane.b32.xlu0 %v860, 127
  %v1022 = vpop.permute.xlu0 %1021
  %1023 = vrot.lane.b32.xlu0 %v861, 127
  %v1024 = vpop.permute.xlu0 %1023
  %1025 = vrot.lane.b32.xlu0 %v862, 127
  %v1026 = vpop.permute.xlu0 %1025
  %1027 = vrot.lane.b32.xlu0 %v863, 127
  %v1028 = vpop.permute.xlu0 %1027
  %1029 = vrot.lane.b32.xlu0 %v864, 127
  %v1030 = vpop.permute.xlu0 %1029
  %1031 = vrot.lane.b32.xlu0 %v865, 127
  %v1032 = vpop.permute.xlu0 %1031
  %1033 = vrot.lane.b32.xlu0 %v866, 127
  %v1034 = vpop.permute.xlu0 %1033
  %1035 = vrot.lane.b32.xlu0 %v867, 127
  %v1036 = vpop.permute.xlu0 %1035
  %v1037 = vsel %vm75, %v1022, %v1024
  %v1038 = vsel %vm75, %v1026, %v1028
  %v1039 = vsel %vm75, %v1030, %v1032
  %v1040 = vsel %vm75, %v1034, %v1036
  %v1049 = vsel %vm75, %v1024, 0.0
  %v1050 = vsel %vm75, %v1028, 0.0
  %v1051 = vsel %vm75, %v1032, 0.0
  %v1052 = vsel %vm75, %v1036, 0.0
  %v1053 = vmul.f32 %v1037, %v84
  %v1054 = vmul.f32 %v1049, %v88
  %v1055 = vmul.f32 %v1038, %v84
  %v1056 = vmul.f32 %v1050, %v88
  %v1057 = vmul.f32 %v1039, %v84
  %v1058 = vmul.f32 %v1051, %v88
  %v1059 = vmul.f32 %v1040, %v84
  %v1060 = vmul.f32 %v1052, %v88
  %v1061 = vld [vmem:[%s12] sm:$0xff]
  %v1062 = vld [vmem:[%s12 + $0x8] sm:$0xff]
  %v1063 = vld [vmem:[%s12 + $0x10] sm:$0xff]
  %v1064 = vld [vmem:[%s12 + $0x18] sm:$0xff]
  %vm1065 = vcmask 785408
  %v1067 = vsel %vm1065, %v1061, 0
  %v1070 = vsel %vm1065, %v1062, 0
  %v1073 = vsel %vm1065, %v1063, 0
  %v1076 = vsel %vm1065, %v1064, 0
  %1078 = vmatprep.subr.mxu0 %v1014
  %1079 = vmatpush1.msra.mxu0 %v1013
  %1080 = vmatprep.subr.mxu0 %v1016
  %1081 = vmatpush1.msra.mxu0 %v1015
  %1082 = vmatprep.subr.mxu0 %v1018
  %1083 = vmatpush1.msra.mxu0 %v1017
  %1084 = vmatprep.subr.mxu0 %v1020
  %1085 = vmatpush1.msra.mxu0 %v1019
  %1086 = vmatprep.subr.mxu0 %v861
  %1087 = vmatpush1.msra.mxu0 %v860
  %1088 = vmatprep.subr.mxu0 %v863
  %1089 = vmatpush1.msra.mxu0 %v862
  %1090 = vmatprep.subr.mxu0 %v865
  %1091 = vmatpush1.msra.mxu0 %v864
  %1092 = vmatprep.subr.mxu0 %v867
  %1093 = vmatpush1.msra.mxu0 %v866
  %1094 = vmatprep.subr.mxu0 %v1054
  %1095 = vmatpush1.msra.mxu0 %v1053
  %1096 = vmatprep.subr.mxu0 %v1056
  %1097 = vmatpush1.msra.mxu0 %v1055
  %1098 = vmatprep.subr.mxu0 %v1058
  %1099 = vmatpush1.msra.mxu0 %v1057
  %1100 = vmatprep.subr.mxu0 %v1060
  %1101 = vmatpush1.msra.mxu0 %v1059
  %1102 = vmatprep.subr.mxu0 0.0
  %1103 = vmatpush1.msra.mxu0 0.0
  %1104 = vmatprep.subr.mxu0 0.0
  %1105 = vmatpush1.msra.mxu0 0.0
  %1106 = vmatprep.subr.mxu0 0.0
  %1107 = vmatpush1.msra.mxu0 0.0
  %1108 = vmatprep.subr.mxu0 0.0
  %1109 = vmatpush1.msra.mxu0 0.0
  %1110 = vmatprep.subr.mxu0 0.0
  %1111 = vmatpush1.msra.mxu0 0.0
  %1112 = vmatprep.subr.mxu0 0.0
  %1113 = vmatpush1.msra.mxu0 0.0
  %1114 = vmatprep.subr.mxu0 0.0
  %1115 = vmatpush1.msra.mxu0 0.0
  %1116 = vmatprep.subr.mxu0 0.0
  %1117 = vmatpush1.msra.mxu0 0.0
  %1118 = vmatprep.subr.mxu0 0.0
  %1119 = vmatpush1.msra.mxu0 0.0
  %1120 = vmatprep.subr.mxu0 0.0
  %1121 = vmatpush1.msra.mxu0 0.0
  %1122 = vmatprep.subr.mxu0 0.0
  %1123 = vmatpush1.msra.mxu0 0.0
  %1124 = vmatprep.subr.mxu0 0.0
  %1125 = vmatpush1.msra.mxu0 0.0
  %1126 = vmatprep.subr.mxu0 0.0
  %1127 = vmatpush1.msra.mxu0 0.0
  %1128 = vmatprep.subr.mxu0 0.0
  %1129 = vmatpush1.msra.mxu0 0.0
  %1130 = vmatprep.subr.mxu0 0.0
  %1131 = vmatpush1.msra.mxu0 0.0
  %1132 = vmatprep.subr.mxu0 0.0
  %1133 = vmatpush1.msra.mxu0 0.0
  %1134 = vmatprep.subr.mxu0 0.0
  %1135 = vmatpush1.msra.mxu0 0.0
  %1136 = vmatprep.subr.mxu0 0.0
  %1137 = vmatpush1.msra.mxu0 0.0
  %1138 = vmatprep.subr.mxu0 0.0
  %1139 = vmatpush1.msra.mxu0 0.0
  %1140 = vmatprep.subr.mxu0 0.0
  %1141 = vmatpush1.msra.mxu0 0.0
  %1142 = vmatprep.mubr.f32.mxu0 0.0
  %1143 = vmatmul.mubr.f32.gmra.mrb[0].mxu0 %v1067
  %v1144 = vpop.f32.mrb[0].mxu0
  %v1145 = vadd.f32 %v951, %v1144
  %v1146 = vpop.f32.mrb[0].mxu0
  %v1147 = vadd.f32 %v953, %v1146
  %1148 = vmatprep.mubr.f32.mxu0 0.0
  %1149 = vmatmul.mubr.f32.gmra.mrb[0].mxu0 %v1070
  %v1150 = vpop.f32.mrb[0].mxu0
  %v1151 = vadd.f32 %v957, %v1150
  %v1152 = vpop.f32.mrb[0].mxu0
  %v1153 = vadd.f32 %v959, %v1152
  %1154 = vmatprep.mubr.f32.mxu0 0.0
  %1155 = vmatmul.mubr.f32.gmra.mrb[0].mxu0 %v1073
  %v1156 = vpop.f32.mrb[0].mxu0
  %v1157 = vadd.f32 %v963, %v1156
  %v1158 = vpop.f32.mrb[0].mxu0
  %v1159 = vadd.f32 %v965, %v1158
  %1160 = vmatprep.mubr.f32.mxu0 0.0
  %1161 = vmatmul.mubr.f32.gmra.mrb[0].mxu0 %v1076
  %v1162 = vpop.f32.mrb[0].mxu0
  %v1163 = vadd.f32 %v969, %v1162
  %v1164 = vpop.f32.mrb[0].mxu0
  %v1165 = vadd.f32 %v971, %v1164
  %1166 = vdwg.mxu0
  %v1167 = vmax.f32 %v1145, 0.0
  %v1168 = vmax.f32 %v1147, 0.0
  %v1169 = vmax.f32 %v1151, 0.0
  %v1170 = vmax.f32 %v1153, 0.0
  %v1171 = vmax.f32 %v1157, 0.0
  %v1172 = vmax.f32 %v1159, 0.0
  %v1173 = vmax.f32 %v1163, 0.0
  %v1174 = vmax.f32 %v1165, 0.0
  %v1175 = vld [vmem:[%s3] sm:$0xff]
  %v1176 = vld [vmem:[%s3 + $0x8] sm:$0xff]
  %v1177 = vld [vmem:[%s3 + $0x10] sm:$0xff]
  %v1178 = vld [vmem:[%s3 + $0x18] sm:$0xff]
  %v1179 = vld [vmem:[%s3 + $0x20] sm:$0xff]
  %v1180 = vld [vmem:[%s3 + $0x28] sm:$0xff]
  %v1181 = vld [vmem:[%s3 + $0x30] sm:$0xff]
  %v1182 = vld [vmem:[%s3 + $0x38] sm:$0xff]
  %vm1183 = vcmask 523264
  %v1185 = vsel %vm1183, %v1167, 0
  %v1188 = vsel %vm1183, %v1169, 0
  %v1191 = vsel %vm1183, %v1171, 0
  %v1194 = vsel %vm1183, %v1173, 0
  %1196 = vmatprep.subr.mxu0 0.0
  %1197 = vmatpush1.msra.mxu0 %v1175
  %1198 = vmatprep.subr.mxu0 0.0
  %1199 = vmatpush1.msra.mxu0 %v1176
  %1200 = vmatprep.subr.mxu0 0.0
  %1201 = vmatpush1.msra.mxu0 %v1177
  %1202 = vmatprep.subr.mxu0 0.0
  %1203 = vmatpush1.msra.mxu0 %v1178
  %1204 = vmatprep.subr.mxu0 0.0
  %1205 = vmatpush1.msra.mxu0 %v1179
  %1206 = vmatprep.subr.mxu0 0.0
  %1207 = vmatpush1.msra.mxu0 %v1180
  %1208 = vmatprep.subr.mxu0 0.0
  %1209 = vmatpush1.msra.mxu0 %v1181
  %1210 = vmatprep.subr.mxu0 0.0
  %1211 = vmatpush1.msra.mxu0 %v1182
  %1212 = vmatprep.subr.mxu0 0.0
  %1213 = vmatpush1.msra.mxu0 0.0
  %1214 = vmatprep.subr.mxu0 0.0
  %1215 = vmatpush1.msra.mxu0 0.0
  %1216 = vmatprep.subr.mxu0 0.0
  %1217 = vmatpush1.msra.mxu0 0.0
  %1218 = vmatprep.subr.mxu0 0.0
  %1219 = vmatpush1.msra.mxu0 0.0
  %1220 = vmatprep.subr.mxu0 0.0
  %1221 = vmatpush1.msra.mxu0 0.0
  %1222 = vmatprep.subr.mxu0 0.0
  %1223 = vmatpush1.msra.mxu0 0.0
  %1224 = vmatprep.subr.mxu0 0.0
  %1225 = vmatpush1.msra.mxu0 0.0
  %1226 = vmatprep.subr.mxu0 0.0
  %1227 = vmatpush1.msra.mxu0 0.0
  %1228 = vmatprep.subr.mxu0 0.0
  %1229 = vmatpush1.msra.mxu0 0.0
  %1230 = vmatprep.subr.mxu0 0.0
  %1231 = vmatpush1.msra.mxu0 0.0
  %1232 = vmatprep.subr.mxu0 0.0
  %1233 = vmatpush1.msra.mxu0 0.0
  %1234 = vmatprep.subr.mxu0 0.0
  %1235 = vmatpush1.msra.mxu0 0.0
  %1236 = vmatprep.subr.mxu0 0.0
  %1237 = vmatpush1.msra.mxu0 0.0
  %1238 = vmatprep.subr.mxu0 0.0
  %1239 = vmatpush1.msra.mxu0 0.0
  %1240 = vmatprep.subr.mxu0 0.0
  %1241 = vmatpush1.msra.mxu0 0.0
  %1242 = vmatprep.subr.mxu0 0.0
  %1243 = vmatpush1.msra.mxu0 0.0
  %1244 = vmatprep.subr.mxu0 0.0
  %1245 = vmatpush1.msra.mxu0 0.0
  %1246 = vmatprep.subr.mxu0 0.0
  %1247 = vmatpush1.msra.mxu0 0.0
  %1248 = vmatprep.subr.mxu0 0.0
  %1249 = vmatpush1.msra.mxu0 0.0
  %1250 = vmatprep.subr.mxu0 0.0
  %1251 = vmatpush1.msra.mxu0 0.0
  %1252 = vmatprep.subr.mxu0 0.0
  %1253 = vmatpush1.msra.mxu0 0.0
  %1254 = vmatprep.subr.mxu0 0.0
  %1255 = vmatpush1.msra.mxu0 0.0
  %1256 = vmatprep.subr.mxu0 0.0
  %1257 = vmatpush1.msra.mxu0 0.0
  %1258 = vmatprep.subr.mxu0 0.0
  %1259 = vmatpush1.msra.mxu0 0.0
  %1260 = vmatprep.mubr.f32.mxu0 0.0
  %1261 = vmatmul.mubr.f32.gmra.mrb[0].mxu0 %v1185
  %v1262 = vpop.f32.mrb[0].mxu0
  %v1263 = vadd.f32 0.0, %v1262
  %v1264 = vpop.f32.mrb[0].mxu0
  %1265 = vmatprep.mubr.f32.mxu0 0.0
  %1266 = vmatmul.mubr.f32.gmra.mrb[0].mxu0 %v1188
  %v1267 = vpop.f32.mrb[0].mxu0
  %v1268 = vadd.f32 0.0, %v1267
  %v1269 = vpop.f32.mrb[0].mxu0
  %1270 = vmatprep.mubr.f32.mxu0 0.0
  %1271 = vmatmul.mubr.f32.gmra.mrb[0].mxu0 %v1191
  %v1272 = vpop.f32.mrb[0].mxu0
  %v1273 = vadd.f32 0.0, %v1272
  %v1274 = vpop.f32.mrb[0].mxu0
  %1275 = vmatprep.mubr.f32.mxu0 0.0
  %1276 = vmatmul.mubr.f32.gmra.mrb[0].mxu0 %v1194
  %v1277 = vpop.f32.mrb[0].mxu0
  %v1278 = vadd.f32 0.0, %v1277
  %v1279 = vpop.f32.mrb[0].mxu0
  %1280 = vdwg.mxu0
  %vm1281 = vcmask 64512
  %1282 = vst.msk [vmem:[%s13] sm:$0xff] %vm1281, %v1263
  %1283 = vst.msk [vmem:[%s13 + $0x8] sm:$0xff] %vm1281, %v1268
  %1284 = vst.msk [vmem:[%s13 + $0x10] sm:$0xff] %vm1281, %v1273
  %1285 = vst.msk [vmem:[%s13 + $0x18] sm:$0xff] %vm1281, %v1278
  %1286 = vrot.lane.b32.xlu0 %v1167, 64
  %v1287 = vpop.permute.xlu0 %1286
  %1288 = vrot.lane.b32.xlu0 %v1169, 64
  %v1289 = vpop.permute.xlu0 %1288
  %1290 = vrot.lane.b32.xlu0 %v1171, 64
  %v1291 = vpop.permute.xlu0 %1290
  %1292 = vrot.lane.b32.xlu0 %v1173, 64
  %v1293 = vpop.permute.xlu0 %1292
  %v1294 = vsel %vm1183, %v1287, 0
  %v1296 = vsel %vm1183, %v1289, 0
  %v1298 = vsel %vm1183, %v1291, 0
  %v1300 = vsel %vm1183, %v1293, 0
  %1302 = vmatprep.subr.mxu0 0.0
  %1303 = vmatpush1.msra.mxu0 %v1175
  %1304 = vmatprep.subr.mxu0 0.0
  %1305 = vmatpush1.msra.mxu0 %v1176
  %1306 = vmatprep.subr.mxu0 0.0
  %1307 = vmatpush1.msra.mxu0 %v1177
  %1308 = vmatprep.subr.mxu0 0.0
  %1309 = vmatpush1.msra.mxu0 %v1178
  %1310 = vmatprep.subr.mxu0 0.0
  %1311 = vmatpush1.msra.mxu0 %v1179
  %1312 = vmatprep.subr.mxu0 0.0
  %1313 = vmatpush1.msra.mxu0 %v1180
  %1314 = vmatprep.subr.mxu0 0.0
  %1315 = vmatpush1.msra.mxu0 %v1181
  %1316 = vmatprep.subr.mxu0 0.0
  %1317 = vmatpush1.msra.mxu0 %v1182
  %1318 = vmatprep.subr.mxu0 0.0
  %1319 = vmatpush1.msra.mxu0 0.0
  %1320 = vmatprep.subr.mxu0 0.0
  %1321 = vmatpush1.msra.mxu0 0.0
  %1322 = vmatprep.subr.mxu0 0.0
  %1323 = vmatpush1.msra.mxu0 0.0
  %1324 = vmatprep.subr.mxu0 0.0
  %1325 = vmatpush1.msra.mxu0 0.0
  %1326 = vmatprep.subr.mxu0 0.0
  %1327 = vmatpush1.msra.mxu0 0.0
  %1328 = vmatprep.subr.mxu0 0.0
  %1329 = vmatpush1.msra.mxu0 0.0
  %1330 = vmatprep.subr.mxu0 0.0
  %1331 = vmatpush1.msra.mxu0 0.0
  %1332 = vmatprep.subr.mxu0 0.0
  %1333 = vmatpush1.msra.mxu0 0.0
  %1334 = vmatprep.subr.mxu0 0.0
  %1335 = vmatpush1.msra.mxu0 0.0
  %1336 = vmatprep.subr.mxu0 0.0
  %1337 = vmatpush1.msra.mxu0 0.0
  %1338 = vmatprep.subr.mxu0 0.0
  %1339 = vmatpush1.msra.mxu0 0.0
  %1340 = vmatprep.subr.mxu0 0.0
  %1341 = vmatpush1.msra.mxu0 0.0
  %1342 = vmatprep.subr.mxu0 0.0
  %1343 = vmatpush1.msra.mxu0 0.0
  %1344 = vmatprep.subr.mxu0 0.0
  %1345 = vmatpush1.msra.mxu0 0.0
  %1346 = vmatprep.subr.mxu0 0.0
  %1347 = vmatpush1.msra.mxu0 0.0
  %1348 = vmatprep.subr.mxu0 0.0
  %1349 = vmatpush1.msra.mxu0 0.0
  %1350 = vmatprep.subr.mxu0 0.0
  %1351 = vmatpush1.msra.mxu0 0.0
  %1352 = vmatprep.subr.mxu0 0.0
  %1353 = vmatpush1.msra.mxu0 0.0
  %1354 = vmatprep.subr.mxu0 0.0
  %1355 = vmatpush1.msra.mxu0 0.0
  %1356 = vmatprep.subr.mxu0 0.0
  %1357 = vmatpush1.msra.mxu0 0.0
  %1358 = vmatprep.subr.mxu0 0.0
  %1359 = vmatpush1.msra.mxu0 0.0
  %1360 = vmatprep.subr.mxu0 0.0
  %1361 = vmatpush1.msra.mxu0 0.0
  %1362 = vmatprep.subr.mxu0 0.0
  %1363 = vmatpush1.msra.mxu0 0.0
  %1364 = vmatprep.subr.mxu0 0.0
  %1365 = vmatpush1.msra.mxu0 0.0
  %1366 = vmatprep.mubr.f32.mxu0 0.0
  %1367 = vmatmul.mubr.f32.gmra.mrb[0].mxu0 %v1294
  %v1368 = vpop.f32.mrb[0].mxu0
  %v1369 = vadd.f32 0.0, %v1368
  %v1370 = vpop.f32.mrb[0].mxu0
  %1371 = vmatprep.mubr.f32.mxu0 0.0
  %1372 = vmatmul.mubr.f32.gmra.mrb[0].mxu0 %v1296
  %v1373 = vpop.f32.mrb[0].mxu0
  %v1374 = vadd.f32 0.0, %v1373
  %v1375 = vpop.f32.mrb[0].mxu0
  %1376 = vmatprep.mubr.f32.mxu0 0.0
  %1377 = vmatmul.mubr.f32.gmra.mrb[0].mxu0 %v1298
  %v1378 = vpop.f32.mrb[0].mxu0
  %v1379 = vadd.f32 0.0, %v1378
  %v1380 = vpop.f32.mrb[0].mxu0
  %1381 = vmatprep.mubr.f32.mxu0 0.0
  %1382 = vmatmul.mubr.f32.gmra.mrb[0].mxu0 %v1300
  %v1383 = vpop.f32.mrb[0].mxu0
  %v1384 = vadd.f32 0.0, %v1383
  %v1385 = vpop.f32.mrb[0].mxu0
  %1386 = vdwg.mxu0
  %s1387 = scalar_lea.vmem %s13, 32
  %1388 = vst.msk [vmem:[%s1387] sm:$0xff] %vm1281, %v1369
  %1389 = vst.msk [vmem:[%s1387 + $0x8] sm:$0xff] %vm1281, %v1374
  %1390 = vst.msk [vmem:[%s1387 + $0x10] sm:$0xff] %vm1281, %v1379
  %1391 = vst.msk [vmem:[%s1387 + $0x18] sm:$0xff] %vm1281, %v1384
  %v1393 = vsel %vm1183, %v1168, 0
  %v1396 = vsel %vm1183, %v1170, 0
  %v1399 = vsel %vm1183, %v1172, 0
  %v1402 = vsel %vm1183, %v1174, 0
  %1404 = vmatprep.subr.mxu0 0.0
  %1405 = vmatpush1.msra.mxu0 %v1175
  %1406 = vmatprep.subr.mxu0 0.0
  %1407 = vmatpush1.msra.mxu0 %v1176
  %1408 = vmatprep.subr.mxu0 0.0
  %1409 = vmatpush1.msra.mxu0 %v1177
  %1410 = vmatprep.subr.mxu0 0.0
  %1411 = vmatpush1.msra.mxu0 %v1178
  %1412 = vmatprep.subr.mxu0 0.0
  %1413 = vmatpush1.msra.mxu0 %v1179
  %1414 = vmatprep.subr.mxu0 0.0
  %1415 = vmatpush1.msra.mxu0 %v1180
  %1416 = vmatprep.subr.mxu0 0.0
  %1417 = vmatpush1.msra.mxu0 %v1181
  %1418 = vmatprep.subr.mxu0 0.0
  %1419 = vmatpush1.msra.mxu0 %v1182
  %1420 = vmatprep.subr.mxu0 0.0
  %1421 = vmatpush1.msra.mxu0 0.0
  %1422 = vmatprep.subr.mxu0 0.0
  %1423 = vmatpush1.msra.mxu0 0.0
  %1424 = vmatprep.subr.mxu0 0.0
  %1425 = vmatpush1.msra.mxu0 0.0
  %1426 = vmatprep.subr.mxu0 0.0
  %1427 = vmatpush1.msra.mxu0 0.0
  %1428 = vmatprep.subr.mxu0 0.0
  %1429 = vmatpush1.msra.mxu0 0.0
  %1430 = vmatprep.subr.mxu0 0.0
  %1431 = vmatpush1.msra.mxu0 0.0
  %1432 = vmatprep.subr.mxu0 0.0
  %1433 = vmatpush1.msra.mxu0 0.0
  %1434 = vmatprep.subr.mxu0 0.0
  %1435 = vmatpush1.msra.mxu0 0.0
  %1436 = vmatprep.subr.mxu0 0.0
  %1437 = vmatpush1.msra.mxu0 0.0
  %1438 = vmatprep.subr.mxu0 0.0
  %1439 = vmatpush1.msra.mxu0 0.0
  %1440 = vmatprep.subr.mxu0 0.0
  %1441 = vmatpush1.msra.mxu0 0.0
  %1442 = vmatprep.subr.mxu0 0.0
  %1443 = vmatpush1.msra.mxu0 0.0
  %1444 = vmatprep.subr.mxu0 0.0
  %1445 = vmatpush1.msra.mxu0 0.0
  %1446 = vmatprep.subr.mxu0 0.0
  %1447 = vmatpush1.msra.mxu0 0.0
  %1448 = vmatprep.subr.mxu0 0.0
  %1449 = vmatpush1.msra.mxu0 0.0
  %1450 = vmatprep.subr.mxu0 0.0
  %1451 = vmatpush1.msra.mxu0 0.0
  %1452 = vmatprep.subr.mxu0 0.0
  %1453 = vmatpush1.msra.mxu0 0.0
  %1454 = vmatprep.subr.mxu0 0.0
  %1455 = vmatpush1.msra.mxu0 0.0
  %1456 = vmatprep.subr.mxu0 0.0
  %1457 = vmatpush1.msra.mxu0 0.0
  %1458 = vmatprep.subr.mxu0 0.0
  %1459 = vmatpush1.msra.mxu0 0.0
  %1460 = vmatprep.subr.mxu0 0.0
  %1461 = vmatpush1.msra.mxu0 0.0
  %1462 = vmatprep.subr.mxu0 0.0
  %1463 = vmatpush1.msra.mxu0 0.0
  %1464 = vmatprep.subr.mxu0 0.0
  %1465 = vmatpush1.msra.mxu0 0.0
  %1466 = vmatprep.subr.mxu0 0.0
  %1467 = vmatpush1.msra.mxu0 0.0
  %1468 = vmatprep.mubr.f32.mxu0 0.0
  %1469 = vmatmul.mubr.f32.gmra.mrb[0].mxu0 %v1393
  %v1470 = vpop.f32.mrb[0].mxu0
  %v1471 = vadd.f32 0.0, %v1470
  %v1472 = vpop.f32.mrb[0].mxu0
  %1473 = vmatprep.mubr.f32.mxu0 0.0
  %1474 = vmatmul.mubr.f32.gmra.mrb[0].mxu0 %v1396
  %v1475 = vpop.f32.mrb[0].mxu0
  %v1476 = vadd.f32 0.0, %v1475
  %v1477 = vpop.f32.mrb[0].mxu0
  %1478 = vmatprep.mubr.f32.mxu0 0.0
  %1479 = vmatmul.mubr.f32.gmra.mrb[0].mxu0 %v1399
  %v1480 = vpop.f32.mrb[0].mxu0
  %v1481 = vadd.f32 0.0, %v1480
  %v1482 = vpop.f32.mrb[0].mxu0
  %1483 = vmatprep.mubr.f32.mxu0 0.0
  %1484 = vmatmul.mubr.f32.gmra.mrb[0].mxu0 %v1402
  %v1485 = vpop.f32.mrb[0].mxu0
  %v1486 = vadd.f32 0.0, %v1485
  %v1487 = vpop.f32.mrb[0].mxu0
  %1488 = vdwg.mxu0
  %s1489 = scalar_lea.vmem %s13, 64
  %1490 = vst.msk [vmem:[%s1489] sm:$0xff] %vm1281, %v1471
  %1491 = vst.msk [vmem:[%s1489 + $0x8] sm:$0xff] %vm1281, %v1476
  %1492 = vst.msk [vmem:[%s1489 + $0x10] sm:$0xff] %vm1281, %v1481
  %1493 = vst.msk [vmem:[%s1489 + $0x18] sm:$0xff] %vm1281, %v1486
  %1494 = vrot.lane.b32.xlu0 %v1168, 64
  %v1495 = vpop.permute.xlu0 %1494
  %1496 = vrot.lane.b32.xlu0 %v1170, 64
  %v1497 = vpop.permute.xlu0 %1496
  %1498 = vrot.lane.b32.xlu0 %v1172, 64
  %v1499 = vpop.permute.xlu0 %1498
  %1500 = vrot.lane.b32.xlu0 %v1174, 64
  %v1501 = vpop.permute.xlu0 %1500
  %v1502 = vsel %vm1183, %v1495, 0
  %v1504 = vsel %vm1183, %v1497, 0
  %v1506 = vsel %vm1183, %v1499, 0
  %v1508 = vsel %vm1183, %v1501, 0
  %1510 = vmatprep.subr.mxu0 0.0
  %1511 = vmatpush1.msra.mxu0 %v1175
  %1512 = vmatprep.subr.mxu0 0.0
  %1513 = vmatpush1.msra.mxu0 %v1176
  %1514 = vmatprep.subr.mxu0 0.0
  %1515 = vmatpush1.msra.mxu0 %v1177
  %1516 = vmatprep.subr.mxu0 0.0
  %1517 = vmatpush1.msra.mxu0 %v1178
  %1518 = vmatprep.subr.mxu0 0.0
  %1519 = vmatpush1.msra.mxu0 %v1179
  %1520 = vmatprep.subr.mxu0 0.0
  %1521 = vmatpush1.msra.mxu0 %v1180
  %1522 = vmatprep.subr.mxu0 0.0
  %1523 = vmatpush1.msra.mxu0 %v1181
  %1524 = vmatprep.subr.mxu0 0.0
  %1525 = vmatpush1.msra.mxu0 %v1182
  %1526 = vmatprep.subr.mxu0 0.0
  %1527 = vmatpush1.msra.mxu0 0.0
  %1528 = vmatprep.subr.mxu0 0.0
  %1529 = vmatpush1.msra.mxu0 0.0
  %1530 = vmatprep.subr.mxu0 0.0
  %1531 = vmatpush1.msra.mxu0 0.0
  %1532 = vmatprep.subr.mxu0 0.0
  %1533 = vmatpush1.msra.mxu0 0.0
  %1534 = vmatprep.subr.mxu0 0.0
  %1535 = vmatpush1.msra.mxu0 0.0
  %1536 = vmatprep.subr.mxu0 0.0
  %1537 = vmatpush1.msra.mxu0 0.0
  %1538 = vmatprep.subr.mxu0 0.0
  %1539 = vmatpush1.msra.mxu0 0.0
  %1540 = vmatprep.subr.mxu0 0.0
  %1541 = vmatpush1.msra.mxu0 0.0
  %1542 = vmatprep.subr.mxu0 0.0
  %1543 = vmatpush1.msra.mxu0 0.0
  %1544 = vmatprep.subr.mxu0 0.0
  %1545 = vmatpush1.msra.mxu0 0.0
  %1546 = vmatprep.subr.mxu0 0.0
  %1547 = vmatpush1.msra.mxu0 0.0
  %1548 = vmatprep.subr.mxu0 0.0
  %1549 = vmatpush1.msra.mxu0 0.0
  %1550 = vmatprep.subr.mxu0 0.0
  %1551 = vmatpush1.msra.mxu0 0.0
  %1552 = vmatprep.subr.mxu0 0.0
  %1553 = vmatpush1.msra.mxu0 0.0
  %1554 = vmatprep.subr.mxu0 0.0
  %1555 = vmatpush1.msra.mxu0 0.0
  %1556 = vmatprep.subr.mxu0 0.0
  %1557 = vmatpush1.msra.mxu0 0.0
  %1558 = vmatprep.subr.mxu0 0.0
  %1559 = vmatpush1.msra.mxu0 0.0
  %1560 = vmatprep.subr.mxu0 0.0
  %1561 = vmatpush1.msra.mxu0 0.0
  %1562 = vmatprep.subr.mxu0 0.0
  %1563 = vmatpush1.msra.mxu0 0.0
  %1564 = vmatprep.subr.mxu0 0.0
  %1565 = vmatpush1.msra.mxu0 0.0
  %1566 = vmatprep.subr.mxu0 0.0
  %1567 = vmatpush1.msra.mxu0 0.0
  %1568 = vmatprep.subr.mxu0 0.0
  %1569 = vmatpush1.msra.mxu0 0.0
  %1570 = vmatprep.subr.mxu0 0.0
  %1571 = vmatpush1.msra.mxu0 0.0
  %1572 = vmatprep.subr.mxu0 0.0
  %1573 = vmatpush1.msra.mxu0 0.0
  %1574 = vmatprep.mubr.f32.mxu0 0.0
  %1575 = vmatmul.mubr.f32.gmra.mrb[0].mxu0 %v1502
  %v1576 = vpop.f32.mrb[0].mxu0
  %v1577 = vadd.f32 0.0, %v1576
  %v1578 = vpop.f32.mrb[0].mxu0
  %1579 = vmatprep.mubr.f32.mxu0 0.0
  %1580 = vmatmul.mubr.f32.gmra.mrb[0].mxu0 %v1504
  %v1581 = vpop.f32.mrb[0].mxu0
  %v1582 = vadd.f32 0.0, %v1581
  %v1583 = vpop.f32.mrb[0].mxu0
  %1584 = vmatprep.mubr.f32.mxu0 0.0
  %1585 = vmatmul.mubr.f32.gmra.mrb[0].mxu0 %v1506
  %v1586 = vpop.f32.mrb[0].mxu0
  %v1587 = vadd.f32 0.0, %v1586
  %v1588 = vpop.f32.mrb[0].mxu0
  %1589 = vmatprep.mubr.f32.mxu0 0.0
  %1590 = vmatmul.mubr.f32.gmra.mrb[0].mxu0 %v1508
  %v1591 = vpop.f32.mrb[0].mxu0
  %v1592 = vadd.f32 0.0, %v1591
  %v1593 = vpop.f32.mrb[0].mxu0
  %1594 = vdwg.mxu0
  %s1595 = scalar_lea.vmem %s13, 96
  %1596 = vst.msk [vmem:[%s1595] sm:$0xff] %vm1281, %v1577
  %1597 = vst.msk [vmem:[%s1595 + $0x8] sm:$0xff] %vm1281, %v1582
  %1598 = vst.msk [vmem:[%s1595 + $0x10] sm:$0xff] %vm1281, %v1587
  %1599 = vst.msk [vmem:[%s1595 + $0x18] sm:$0xff] %vm1281, %v1592
  // Predicated region
  $region54: #{resnet1d_forward.2} parent=0 // pred_check
    _
  $region55: #{resnet1d_forward.2} parent=0 // pred_check_branch
    %1601 = sbr.rel (0) target = $region57
  $region56: #{resnet1d_forward.2} parent=0 // pred_region
    _
  $region57: #{resnet1d_forward.2} parent=0 // pred_fallthru
    _
  // Predicated region
  $region58: #{resnet1d_forward.2} parent=0 // pred_check
    _
  $region59: #{resnet1d_forward.2} parent=0 // pred_check_branch
    %1603 = sbr.rel (0) target = $region61
  $region60: #{resnet1d_forward.2} parent=0 // pred_region
    _
  $region61: #{resnet1d_forward.2} parent=0 // pred_fallthru
    _

</llo_original>
